<compile_context>
chip_gen: v7x
topology: tpu7x:2x2x1
jax: 0.10.0
libtpu: 0.0.40
codegen_flags: <defaults>
</compile_context>

<pallas_src>
import math
import functools

import jax
import jax.numpy as jnp
from jax.experimental import pallas as pl
from jax.experimental.pallas import tpu as pltpu


# ----------------------------- helpers -------------------------------------

_VMEM_LIMIT = 64 * 1024 * 1024  # > default scoped limit everywhere, <= physical


def _cp(*sem):
    return pltpu.CompilerParams(dimension_semantics=sem,
                                vmem_limit_bytes=_VMEM_LIMIT)


def _round_up(x, m):
    return (x + m - 1) // m * m


def _pick_row_tile(m, target):
    """Largest divisor of m that is <= target and a multiple of 8 (else m)."""
    if m <= target:
        return m
    t = (target // 8) * 8
    while t >= 8:
        if m % t == 0:
            return t
        t -= 8
    return m


def _pick_lane_tile(n, target):
    """Largest divisor of n that is <= target and a multiple of 128 (else n)."""
    if n <= target:
        return n
    t = (target // 128) * 128
    while t >= 128:
        if n % t == 0:
            return t
        t -= 128
    return n


def _layernorm(x, g, b, eps):
    mean = jnp.mean(x, axis=-1, keepdims=True)
    var = jnp.mean((x - mean) ** 2, axis=-1, keepdims=True)
    return (x - mean) * jax.lax.rsqrt(var + eps) * g + b


# ----------------------------- Pallas kernels -------------------------------

def _ln_qkv_kernel(x_ref, g_ref, b_ref, w_ref, bias_ref, o_ref, *, eps):
    # Fused LayerNorm(ln1) + concatenated Q|K|V projection -> bf16 slab.
    # x: [tm, C] fp32, w: [C, 3C] bf16, bias: [1, 3C] fp32 -> o: [tm, 3C] bf16
    xn = _layernorm(x_ref[...], g_ref[...], b_ref[...], eps)
    o_ref[...] = (
        jnp.dot(xn.astype(jnp.bfloat16), w_ref[...],
                preferred_element_type=jnp.float32)
        + bias_ref[...]
    ).astype(o_ref.dtype)


def _attn_proj_kernel(qkv_ref, x_ref, wp_ref, bp_ref, o_ref, att_ref, *,
                      n_head, scale):
    # One batch element per grid step.  Heads are processed one at a time so
    # the fp32 scores/probs are only ever [T, T].  The output projection +
    # residual add are fused into the epilogue, so o_ref holds the new
    # residual stream (fp32, lane-dense [T, C]).
    T, C3 = qkv_ref.shape
    C = C3 // 3
    D = C // n_head

    qkv = qkv_ref[...]                 # [T, 3C] bf16
    x = x_ref[...]                     # [T, C]  fp32

    row = jax.lax.broadcasted_iota(jnp.int32, (T, T), 0)
    col = jax.lax.broadcasted_iota(jnp.int32, (T, T), 1)
    causal = col <= row                # diagonal always unmasked -> no NaN rows

    y_heads = []
    for h in range(n_head):            # static loop: static channel slices
        q = qkv[:, h * D:(h + 1) * D] * scale          # scale folded into q
        k = qkv[:, C + h * D:C + (h + 1) * D]
        v = qkv[:, 2 * C + h * D:2 * C + (h + 1) * D]
        # s = q @ k.T (contract over head dim), fp32 accumulation on the MXU.
        s = jax.lax.dot_general(q, k, (((1,), (1,)), ((), ())),
                                preferred_element_type=jnp.float32)  # [T, T]
        s = jnp.where(causal, s, -jnp.inf)
        s = s - jnp.max(s, axis=-1, keepdims=True)
        e = jnp.exp(s)
        p = e * pl.reciprocal(jnp.sum(e, axis=-1, keepdims=True), approx=True)
        att_ref[h, :, :] = p.astype(att_ref.dtype)      # attn_save (bf16)
        y_heads.append(jnp.dot(p.astype(jnp.bfloat16), v,
                               preferred_element_type=jnp.float32))  # [T, D]

    y = jnp.concatenate(y_heads, axis=-1)               # [T, C] fp32
    o_ref[...] = (
        x
        + jnp.dot(y.astype(jnp.bfloat16), wp_ref[...],
                  preferred_element_type=jnp.float32)
        + bp_ref[...]
    )


def _ln_mlp_residual_kernel(x_ref, g_ref, b_ref, w1_ref, b1_ref,
                            w2_ref, b2_ref, o_ref, *, eps):
    # o = x + Linear2(GELU(Linear1(LayerNorm(x))))
    # TODO(synk): for very large C (>=2048) chunk the 4C hidden axis so the
    # fp32 hidden + both weights stay inside v7x's 64 MiB VMEM.
    x = x_ref[...]
    xn = _layernorm(x, g_ref[...], b_ref[...], eps)
    h = jnp.dot(xn.astype(jnp.bfloat16), w1_ref[...],
                preferred_element_type=jnp.float32) + b1_ref[...]
    h = 0.5 * h * (1.0 + jax.lax.erf(h * (1.0 / math.sqrt(2.0))))  # exact GELU
    o_ref[...] = (
        x
        + jnp.dot(h.astype(jnp.bfloat16), w2_ref[...],
                  preferred_element_type=jnp.float32)
        + b2_ref[...]
    )


def _ln_head_kernel(x_ref, g_ref, b_ref, w_ref, o_ref, *, eps):
    # Fused final LayerNorm + vocab projection (bias-free), tiled over (M, V).
    xn = _layernorm(x_ref[...], g_ref[...], b_ref[...], eps)
    o_ref[...] = jnp.dot(xn.astype(jnp.bfloat16), w_ref[...],
                         preferred_element_type=jnp.float32)


# ----------------------------- wrappers -------------------------------------

def ln_qkv(x2d, gamma, beta, w_qkv, b_qkv, *, eps=1e-5, tm_target=512):
    M, C = x2d.shape
    N = w_qkv.shape[1]
    tm = _pick_row_tile(M, tm_target)
    return pl.pallas_call(
        functools.partial(_ln_qkv_kernel, eps=eps),
        out_shape=jax.ShapeDtypeStruct((M, N), jnp.bfloat16),
        grid=(M // tm,),
        in_specs=[
            pl.BlockSpec((tm, C), lambda i: (i, 0)),
            pl.BlockSpec((1, C), lambda i: (0, 0)),
            pl.BlockSpec((1, C), lambda i: (0, 0)),
            pl.BlockSpec((C, N), lambda i: (0, 0)),   # weights resident
            pl.BlockSpec((1, N), lambda i: (0, 0)),
        ],
        out_specs=pl.BlockSpec((tm, N), lambda i: (i, 0)),
        compiler_params=_cp("parallel"),
    )(x2d, gamma.reshape(1, C), beta.reshape(1, C), w_qkv, b_qkv.reshape(1, N))


def attn_proj_residual(qkv, x3d, w_proj, b_proj, *, n_head):
    """qkv: [B, T, 3C] bf16, x3d: [B, T, C] fp32 residual stream.

    Returns (new residual [B*T, C] fp32, attention maps [B, H, T, T] bf16).
    """
    B, T, C3 = qkv.shape
    C = C3 // 3
    scale = 1.0 / math.sqrt(C // n_head)
    y, att = pl.pallas_call(
        functools.partial(_attn_proj_kernel, n_head=n_head, scale=scale),
        out_shape=(
            jax.ShapeDtypeStruct((B, T, C), jnp.float32),
            jax.ShapeDtypeStruct((B, n_head, T, T), jnp.bfloat16),
        ),
        grid=(B,),
        in_specs=[
            pl.BlockSpec((None, T, C3), lambda b: (b, 0, 0)),
            pl.BlockSpec((None, T, C), lambda b: (b, 0, 0)),
            pl.BlockSpec((C, C), lambda b: (0, 0)),        # proj weight resident
            pl.BlockSpec((1, C), lambda b: (0, 0)),
        ],
        out_specs=(
            pl.BlockSpec((None, T, C), lambda b: (b, 0, 0)),
            pl.BlockSpec((None, n_head, T, T), lambda b: (b, 0, 0, 0)),
        ),
        compiler_params=_cp("parallel"),
    )(qkv, x3d, w_proj, b_proj.reshape(1, C))
    return y.reshape(B * T, C), att


def ln_mlp_residual(x2d, gamma, beta, w1, b1, w2, b2, *, eps=1e-5, tm_target=256):
    # tm_target=256 keeps the [tm, 4C] fp32 hidden comfortable on v7x (64 MiB);
    # raise to 512 on v5e/v6e (128 MiB) for larger shapes.
    M, C = x2d.shape
    H = w1.shape[1]
    tm = _pick_row_tile(M, tm_target)
    return pl.pallas_call(
        functools.partial(_ln_mlp_residual_kernel, eps=eps),
        out_shape=jax.ShapeDtypeStruct((M, C), jnp.float32),
        grid=(M // tm,),
        in_specs=[
            pl.BlockSpec((tm, C), lambda i: (i, 0)),
            pl.BlockSpec((1, C), lambda i: (0, 0)),
            pl.BlockSpec((1, C), lambda i: (0, 0)),
            pl.BlockSpec((C, H), lambda i: (0, 0)),
            pl.BlockSpec((1, H), lambda i: (0, 0)),
            pl.BlockSpec((H, C), lambda i: (0, 0)),
            pl.BlockSpec((1, C), lambda i: (0, 0)),
        ],
        out_specs=pl.BlockSpec((tm, C), lambda i: (i, 0)),
        compiler_params=_cp("parallel"),
    )(x2d, gamma.reshape(1, C), beta.reshape(1, C),
      w1, b1.reshape(1, H), w2, b2.reshape(1, C))


def ln_head(x2d, gamma, beta, w_head, *, eps=1e-5, tm_target=512, tn_target=1024):
    # head_w is padded to a multiple of 128 at init, so tn is always lane-dense.
    M, C = x2d.shape
    V = w_head.shape[1]
    tm = _pick_row_tile(M, tm_target)
    tn = _pick_lane_tile(V, tn_target)
    return pl.pallas_call(
        functools.partial(_ln_head_kernel, eps=eps),
        out_shape=jax.ShapeDtypeStruct((M, V), jnp.float32),
        grid=(M // tm, V // tn),
        in_specs=[
            pl.BlockSpec((tm, C), lambda i, j: (i, 0)),
            pl.BlockSpec((1, C), lambda i, j: (0, 0)),
            pl.BlockSpec((1, C), lambda i, j: (0, 0)),
            pl.BlockSpec((C, tn), lambda i, j: (0, j)),
        ],
        out_specs=pl.BlockSpec((tm, tn), lambda i, j: (i, j)),
        compiler_params=_cp("parallel", "parallel"),
    )(x2d, gamma.reshape(1, C), beta.reshape(1, C), w_head)


# ----------------------------- GPT model -------------------------------------

def init_gpt_params(key, vocab_size, block_size, n_embd, n_head, n_layer):
    assert n_embd % n_head == 0
    std = 0.02
    C = n_embd
    vocab_pad = _round_up(vocab_size, 128)
    keys = jax.random.split(key, 3 + n_layer)

    def nrm(k, shape):
        return std * jax.random.normal(k, shape, dtype=jnp.float32)

    def w_t_bf16(k, out_dim, in_dim):
        # torch Linear weight [out, in] init -> stored pre-transposed [in, out].
        return nrm(k, (out_dim, in_dim)).T.astype(jnp.bfloat16)

    head_w = nrm(keys[2], (vocab_size, C)).T                       # [C, vocab]
    head_w = jnp.pad(head_w, ((0, 0), (0, vocab_pad - vocab_size))
                     ).astype(jnp.bfloat16)                        # lane-dense pad

    params = {
        "tok_emb": nrm(keys[0], (vocab_size, C)),
        "type_emb": nrm(keys[1], (2, C)),
        "pos_emb": jnp.zeros((1, block_size, C), jnp.float32),     # untouched by _init_weights
        "ln_f_g": jnp.ones((C,), jnp.float32),
        "ln_f_b": jnp.zeros((C,), jnp.float32),
        "head_w": head_w,                                          # [C, vocab_pad], bias=False
        "blocks": [],
    }
    for li in range(n_layer):
        bk = jax.random.split(keys[3 + li], 6)
        # q|k|v fused: [C, 3C] (split order q, k, v along the output axis).
        qkv_w = jnp.concatenate(
            [w_t_bf16(bk[0], C, C), w_t_bf16(bk[1], C, C), w_t_bf16(bk[2], C, C)],
            axis=1)
        params["blocks"].append({
            "ln1_g": jnp.ones((C,), jnp.float32), "ln1_b": jnp.zeros((C,), jnp.float32),
            "ln2_g": jnp.ones((C,), jnp.float32), "ln2_b": jnp.zeros((C,), jnp.float32),
            "qkv_w": qkv_w, "qkv_b": jnp.zeros((3 * C,), jnp.float32),
            "proj_w": w_t_bf16(bk[3], C, C), "proj_b": jnp.zeros((C,), jnp.float32),
            "fc_w": w_t_bf16(bk[4], 4 * C, C), "fc_b": jnp.zeros((4 * C,), jnp.float32),
            "fc2_w": w_t_bf16(bk[5], C, 4 * C), "fc2_b": jnp.zeros((C,), jnp.float32),
        })
    return params


def gpt_forward(params, idx, *, n_head, block_size, vocab_size):
    B, T = idx.shape
    assert T <= block_size, "Cannot forward, model block size is exhausted."
    C = params["tok_emb"].shape[1]

    # Embedding gathers / sums stay in plain XLA (cheap, gather-heavy).
    token_embeddings = params["tok_emb"][idx]                      # [B, T, C]
    position_embeddings = params["pos_emb"][:, :T, :]              # [1, T, C]
    type_embeddings = params["type_emb"][1][None, None, :]         # type_emb(ones) -> row 1
    x2d = (token_embeddings + position_embeddings + type_embeddings
           ).astype(jnp.float32).reshape(B * T, C)                 # drop = identity (eval)

    attn_maps = []
    for blk in params["blocks"]:
        # --- LN1 + fused QKV projection (bf16 slab, no transposes needed) ---
        qkv = ln_qkv(x2d, blk["ln1_g"], blk["ln1_b"], blk["qkv_w"], blk["qkv_b"])
        qkv = qkv.reshape(B, T, 3 * C)                             # free view
        # --- causal attention + output proj + residual, fused ---
        x2d, att = attn_proj_residual(qkv, x2d.reshape(B, T, C),
                                      blk["proj_w"], blk["proj_b"],
                                      n_head=n_head)
        attn_maps.append(att)
        # --- x = x + MLP(ln2(x)), LN + MLP + residual fused ---
        x2d = ln_mlp_residual(x2d, blk["ln2_g"], blk["ln2_b"],
                              blk["fc_w"], blk["fc_b"], blk["fc2_w"], blk["fc2_b"])

    # --- ln_f + vocab head, fused and tiled over (rows, padded vocab) ---
    logits = ln_head(x2d, params["ln_f_g"], params["ln_f_b"], params["head_w"])
    logits = logits[:, :vocab_size].reshape(B, T, vocab_size)      # drop vocab padding
    # num_props=0 and scaffold=False -> num = 0, no slicing of logits.
    loss = None  # TODO(synk): targets=None path only; cross-entropy not exercised.
    return logits, loss, attn_maps


# ----------------------------- pure-JAX reference ----------------------------

def _ref_forward(params, idx, *, n_head, vocab_size):
    C = params["tok_emb"].shape[1]
    B, T = idx.shape
    x = (params["tok_emb"][idx] + params["pos_emb"][:, :T, :]
         + params["type_emb"][1][None, None, :]).astype(jnp.float32)
    D = C // n_head
    mask = jnp.tril(jnp.ones((T, T), bool))
    for blk in params["blocks"]:
        xn = _layernorm(x, blk["ln1_g"], blk["ln1_b"], 1e-5)
        qkv = xn @ blk["qkv_w"].astype(jnp.float32) + blk["qkv_b"]
        q, k, v = jnp.split(qkv, 3, axis=-1)
        q = q.reshape(B, T, n_head, D).transpose(0, 2, 1, 3)
        k = k.reshape(B, T, n_head, D).transpose(0, 2, 1, 3)
        v = v.reshape(B, T, n_head, D).transpose(0, 2, 1, 3)
        s = jnp.einsum("bhqd,bhkd->bhqk", q, k) / math.sqrt(D)
        s = jnp.where(mask, s, -jnp.inf)
        p = jax.nn.softmax(s, axis=-1)
        y = jnp.einsum("bhqk,bhkd->bhqd", p, v).transpose(0, 2, 1, 3).reshape(B, T, C)
        x = x + y @ blk["proj_w"].astype(jnp.float32) + blk["proj_b"]
        xn = _layernorm(x, blk["ln2_g"], blk["ln2_b"], 1e-5)
        h = xn @ blk["fc_w"].astype(jnp.float32) + blk["fc_b"]
        h = 0.5 * h * (1.0 + jax.lax.erf(h / math.sqrt(2.0)))
        x = x + h @ blk["fc2_w"].astype(jnp.float32) + blk["fc2_b"]
    xn = _layernorm(x, params["ln_f_g"], params["ln_f_b"], 1e-5)
    logits = xn @ params["head_w"].astype(jnp.float32)
    return logits[..., :vocab_size]


# ----------------------------- main ------------------------------------------

if __name__ == "__main__":
    vocab_size, block_size, n_embd, n_head, n_layer = 48, 8, 32, 4, 2
    B, T = 2, 8

    key = jax.random.PRNGKey(0)
    pkey, ikey = jax.random.split(key)
    params = init_gpt_params(pkey, vocab_size, block_size, n_embd, n_head, n_layer)
    idx = jax.random.randint(ikey, (B, T), 0, vocab_size, dtype=jnp.int32)

    fwd = jax.jit(functools.partial(gpt_forward, n_head=n_head,
                                    block_size=block_size, vocab_size=vocab_size))
    logits, loss, attn_maps = fwd(params, idx)
    jax.block_until_ready(logits)
    for a in attn_maps:
        jax.block_until_ready(a)

    assert logits.shape == (B, T, vocab_size)
    assert len(attn_maps) == n_layer
    assert attn_maps[0].shape == (B, n_head, T, T)
    assert bool(jnp.all(jnp.isfinite(logits)))
    # attention rows must sum to ~1 (bf16 storage + approx reciprocal -> loose tol)
    row_sums = jnp.sum(attn_maps[0].astype(jnp.float32), axis=-1)
    assert bool(jnp.allclose(row_sums, 1.0, atol=2e-2))
    # compare against a pure-JAX fp32 reference (same bf16 weights)
    ref = _ref_forward(params, idx, n_head=n_head, vocab_size=vocab_size)
    assert bool(jnp.allclose(logits, ref, atol=3e-2)), \
        float(jnp.max(jnp.abs(logits - ref)))
    print("KERNEL_OK")
</pallas_src>

<mosaic_0001>
module attributes {stable_mosaic.version = 11 : i64} {
  func.func @_ln_qkv_kernel(%arg0: i32, %arg1: memref<16x32xf32, #tpu.memory_space<vmem>>, %arg2: memref<1x32xf32, #tpu.memory_space<vmem>>, %arg3: memref<1x32xf32, #tpu.memory_space<vmem>>, %arg4: memref<32x96xbf16, #tpu.memory_space<vmem>>, %arg5: memref<1x96xf32, #tpu.memory_space<vmem>>, %arg6: memref<16x96xbf16, #tpu.memory_space<vmem>>) attributes {dimension_semantics = [#tpu.dimension_semantics<parallel>], iteration_bounds = array<i64: 1>, scalar_prefetch = 0 : i64, scratch_operands = 0 : i64, tpu.core_type = #tpu.core_type<tc>, window_params = [{transform_indices = @transform_0, window_bounds = array<i64: 16, 32>}, {pipeline_mode = #tpu.pipeline_mode<synchronous>, transform_indices = @transform_1, window_bounds = array<i64: 1, 32>}, {pipeline_mode = #tpu.pipeline_mode<synchronous>, transform_indices = @transform_2, window_bounds = array<i64: 1, 32>}, {pipeline_mode = #tpu.pipeline_mode<synchronous>, transform_indices = @transform_3, window_bounds = array<i64: 32, 96>}, {pipeline_mode = #tpu.pipeline_mode<synchronous>, transform_indices = @transform_4, window_bounds = array<i64: 1, 96>}, {transform_indices = @transform_5, window_bounds = array<i64: 16, 96>}]} {
    %c0 = arith.constant 0 : index
    %c0_0 = arith.constant 0 : index
    %0 = vector.load %arg1[%c0, %c0_0] : memref<16x32xf32, #tpu.memory_space<vmem>>, vector<16x32xf32>
    %c0_1 = arith.constant 0 : index
    %c0_2 = arith.constant 0 : index
    %1 = vector.load %arg2[%c0_1, %c0_2] : memref<1x32xf32, #tpu.memory_space<vmem>>, vector<1x32xf32>
    %c0_3 = arith.constant 0 : index
    %c0_4 = arith.constant 0 : index
    %2 = vector.load %arg3[%c0_3, %c0_4] : memref<1x32xf32, #tpu.memory_space<vmem>>, vector<1x32xf32>
    %cst = arith.constant dense<0.000000e+00> : vector<16xf32>
    %3 = vector.multi_reduction <add>, %0, %cst [1] : vector<16x32xf32> to vector<16xf32>
    %4 = vector.shape_cast %3 : vector<16xf32> to vector<16x1xf32>
    %cst_5 = arith.constant 3.200000e+01 : f32
    %5 = vector.broadcast %cst_5 : f32 to vector<16x1xf32>
    %6 = arith.divf %4, %5 : vector<16x1xf32>
    %7 = vector.broadcast %6 : vector<16x1xf32> to vector<16x32xf32>
    %8 = arith.subf %0, %7 : vector<16x32xf32>
    %9 = arith.mulf %8, %8 : vector<16x32xf32>
    %cst_6 = arith.constant dense<0.000000e+00> : vector<16xf32>
    %10 = vector.multi_reduction <add>, %9, %cst_6 [1] : vector<16x32xf32> to vector<16xf32>
    %11 = vector.shape_cast %10 : vector<16xf32> to vector<16x1xf32>
    %cst_7 = arith.constant 3.200000e+01 : f32
    %12 = vector.broadcast %cst_7 : f32 to vector<16x1xf32>
    %13 = arith.divf %11, %12 : vector<16x1xf32>
    %14 = vector.broadcast %6 : vector<16x1xf32> to vector<16x32xf32>
    %15 = arith.subf %0, %14 : vector<16x32xf32>
    %cst_8 = arith.constant 9.99999974E-6 : f32
    %16 = vector.broadcast %cst_8 : f32 to vector<16x1xf32>
    %17 = arith.addf %13, %16 : vector<16x1xf32>
    %18 = math.rsqrt %17 : vector<16x1xf32>
    %19 = vector.broadcast %18 : vector<16x1xf32> to vector<16x32xf32>
    %20 = arith.mulf %15, %19 : vector<16x32xf32>
    %21 = vector.broadcast %1 : vector<1x32xf32> to vector<16x32xf32>
    %22 = arith.mulf %20, %21 : vector<16x32xf32>
    %23 = vector.broadcast %2 : vector<1x32xf32> to vector<16x32xf32>
    %24 = arith.addf %22, %23 : vector<16x32xf32>
    %25 = arith.truncf %24 : vector<16x32xf32> to vector<16x32xbf16>
    %c0_9 = arith.constant 0 : index
    %c0_10 = arith.constant 0 : index
    %26 = vector.load %arg4[%c0_9, %c0_10] : memref<32x96xbf16, #tpu.memory_space<vmem>>, vector<32x96xbf16>
    %cst_11 = arith.constant dense<0.000000e+00> : vector<16x96xf32>
    %27 = tpu.matmul %25, %26, %cst_11 {dimension_numbers = #tpu.dot_dimension_numbers<[1], [0], [0], [1], [0, 0, 1, 1], [], []>} : vector<16x32xbf16>, vector<32x96xbf16>, vector<16x96xf32> -> vector<16x96xf32>
    %c0_12 = arith.constant 0 : index
    %c0_13 = arith.constant 0 : index
    %28 = vector.load %arg5[%c0_12, %c0_13] : memref<1x96xf32, #tpu.memory_space<vmem>>, vector<1x96xf32>
    %29 = vector.broadcast %28 : vector<1x96xf32> to vector<16x96xf32>
    %30 = arith.addf %27, %29 : vector<16x96xf32>
    %31 = arith.truncf %30 : vector<16x96xf32> to vector<16x96xbf16>
    %c0_14 = arith.constant 0 : index
    %c0_15 = arith.constant 0 : index
    %32 = vector.load %arg6[%c0_14, %c0_15] : memref<16x96xbf16, #tpu.memory_space<vmem>>, vector<16x96xbf16>
    tpu.vector_store %arg6[%c0_14, %c0_15], %31 {strides = array<i32>} : memref<16x96xbf16, #tpu.memory_space<vmem>>, vector<16x96xbf16>,
    return
  }
  func.func @transform_0(%arg0: i32) -> (i32, i32) {
    %c0_i32 = arith.constant 0 : i32
    %c0_i32_0 = arith.constant 0 : i32
    return %arg0, %c0_i32 : i32, i32
  }
  func.func @transform_1(%arg0: i32) -> (i32, i32) {
    %c0_i32 = arith.constant 0 : i32
    %c0_i32_0 = arith.constant 0 : i32
    %c0_i32_1 = arith.constant 0 : i32
    return %c0_i32, %c0_i32_0 : i32, i32
  }
  func.func @transform_2(%arg0: i32) -> (i32, i32) {
    %c0_i32 = arith.constant 0 : i32
    %c0_i32_0 = arith.constant 0 : i32
    %c0_i32_1 = arith.constant 0 : i32
    return %c0_i32, %c0_i32_0 : i32, i32
  }
  func.func @transform_3(%arg0: i32) -> (i32, i32) {
    %c0_i32 = arith.constant 0 : i32
    %c0_i32_0 = arith.constant 0 : i32
    %c0_i32_1 = arith.constant 0 : i32
    return %c0_i32, %c0_i32_0 : i32, i32
  }
  func.func @transform_4(%arg0: i32) -> (i32, i32) {
    %c0_i32 = arith.constant 0 : i32
    %c0_i32_0 = arith.constant 0 : i32
    %c0_i32_1 = arith.constant 0 : i32
    return %c0_i32, %c0_i32_0 : i32, i32
  }
  func.func @transform_5(%arg0: i32) -> (i32, i32) {
    %c0_i32 = arith.constant 0 : i32
    %c0_i32_0 = arith.constant 0 : i32
    return %arg0, %c0_i32 : i32, i32
  }
}

module attributes {stable_mosaic.version = 11 : i64} {
  func.func @_ln_mlp_residual_kernel(%arg0: i32, %arg1: memref<16x32xf32, #tpu.memory_space<vmem>>, %arg2: memref<1x32xf32, #tpu.memory_space<vmem>>, %arg3: memref<1x32xf32, #tpu.memory_space<vmem>>, %arg4: memref<32x128xbf16, #tpu.memory_space<vmem>>, %arg5: memref<1x128xf32, #tpu.memory_space<vmem>>, %arg6: memref<128x32xbf16, #tpu.memory_space<vmem>>, %arg7: memref<1x32xf32, #tpu.memory_space<vmem>>, %arg8: memref<16x32xf32, #tpu.memory_space<vmem>>) attributes {dimension_semantics = [#tpu.dimension_semantics<parallel>], iteration_bounds = array<i64: 1>, scalar_prefetch = 0 : i64, scratch_operands = 0 : i64, tpu.core_type = #tpu.core_type<tc>, window_params = [{transform_indices = @transform_0, window_bounds = array<i64: 16, 32>}, {pipeline_mode = #tpu.pipeline_mode<synchronous>, transform_indices = @transform_1, window_bounds = array<i64: 1, 32>}, {pipeline_mode = #tpu.pipeline_mode<synchronous>, transform_indices = @transform_2, window_bounds = array<i64: 1, 32>}, {pipeline_mode = #tpu.pipeline_mode<synchronous>, transform_indices = @transform_3, window_bounds = array<i64: 32, 128>}, {pipeline_mode = #tpu.pipeline_mode<synchronous>, transform_indices = @transform_4, window_bounds = array<i64: 1, 128>}, {pipeline_mode = #tpu.pipeline_mode<synchronous>, transform_indices = @transform_5, window_bounds = array<i64: 128, 32>}, {pipeline_mode = #tpu.pipeline_mode<synchronous>, transform_indices = @transform_6, window_bounds = array<i64: 1, 32>}, {transform_indices = @transform_7, window_bounds = array<i64: 16, 32>}]} {
    %c0 = arith.constant 0 : index
    %c0_0 = arith.constant 0 : index
    %0 = vector.load %arg1[%c0, %c0_0] : memref<16x32xf32, #tpu.memory_space<vmem>>, vector<16x32xf32>
    %c0_1 = arith.constant 0 : index
    %c0_2 = arith.constant 0 : index
    %1 = vector.load %arg2[%c0_1, %c0_2] : memref<1x32xf32, #tpu.memory_space<vmem>>, vector<1x32xf32>
    %c0_3 = arith.constant 0 : index
    %c0_4 = arith.constant 0 : index
    %2 = vector.load %arg3[%c0_3, %c0_4] : memref<1x32xf32, #tpu.memory_space<vmem>>, vector<1x32xf32>
    %cst = arith.constant dense<0.000000e+00> : vector<16xf32>
    %3 = vector.multi_reduction <add>, %0, %cst [1] : vector<16x32xf32> to vector<16xf32>
    %4 = vector.shape_cast %3 : vector<16xf32> to vector<16x1xf32>
    %cst_5 = arith.constant 3.200000e+01 : f32
    %5 = vector.broadcast %cst_5 : f32 to vector<16x1xf32>
    %6 = arith.divf %4, %5 : vector<16x1xf32>
    %7 = vector.broadcast %6 : vector<16x1xf32> to vector<16x32xf32>
    %8 = arith.subf %0, %7 : vector<16x32xf32>
    %9 = arith.mulf %8, %8 : vector<16x32xf32>
    %cst_6 = arith.constant dense<0.000000e+00> : vector<16xf32>
    %10 = vector.multi_reduction <add>, %9, %cst_6 [1] : vector<16x32xf32> to vector<16xf32>
    %11 = vector.shape_cast %10 : vector<16xf32> to vector<16x1xf32>
    %cst_7 = arith.constant 3.200000e+01 : f32
    %12 = vector.broadcast %cst_7 : f32 to vector<16x1xf32>
    %13 = arith.divf %11, %12 : vector<16x1xf32>
    %14 = vector.broadcast %6 : vector<16x1xf32> to vector<16x32xf32>
    %15 = arith.subf %0, %14 : vector<16x32xf32>
    %cst_8 = arith.constant 9.99999974E-6 : f32
    %16 = vector.broadcast %cst_8 : f32 to vector<16x1xf32>
    %17 = arith.addf %13, %16 : vector<16x1xf32>
    %18 = math.rsqrt %17 : vector<16x1xf32>
    %19 = vector.broadcast %18 : vector<16x1xf32> to vector<16x32xf32>
    %20 = arith.mulf %15, %19 : vector<16x32xf32>
    %21 = vector.broadcast %1 : vector<1x32xf32> to vector<16x32xf32>
    %22 = arith.mulf %20, %21 : vector<16x32xf32>
    %23 = vector.broadcast %2 : vector<1x32xf32> to vector<16x32xf32>
    %24 = arith.addf %22, %23 : vector<16x32xf32>
    %25 = arith.truncf %24 : vector<16x32xf32> to vector<16x32xbf16>
    %c0_9 = arith.constant 0 : index
    %c0_10 = arith.constant 0 : index
    %26 = vector.load %arg4[%c0_9, %c0_10] : memref<32x128xbf16, #tpu.memory_space<vmem>>, vector<32x128xbf16>
    %cst_11 = arith.constant dense<0.000000e+00> : vector<16x128xf32>
    %27 = tpu.matmul %25, %26, %cst_11 {dimension_numbers = #tpu.dot_dimension_numbers<[1], [0], [0], [1], [0, 0, 1, 1], [], []>} : vector<16x32xbf16>, vector<32x128xbf16>, vector<16x128xf32> -> vector<16x128xf32>
    %c0_12 = arith.constant 0 : index
    %c0_13 = arith.constant 0 : index
    %28 = vector.load %arg5[%c0_12, %c0_13] : memref<1x128xf32, #tpu.memory_space<vmem>>, vector<1x128xf32>
    %29 = vector.broadcast %28 : vector<1x128xf32> to vector<16x128xf32>
    %30 = arith.addf %27, %29 : vector<16x128xf32>
    %cst_14 = arith.constant 5.000000e-01 : f32
    %31 = vector.broadcast %cst_14 : f32 to vector<16x128xf32>
    %32 = arith.mulf %31, %30 : vector<16x128xf32>
    %cst_15 = arith.constant 0.707106769 : f32
    %33 = vector.broadcast %cst_15 : f32 to vector<16x128xf32>
    %34 = arith.mulf %30, %33 : vector<16x128xf32>
    %35 = math.erf %34 : vector<16x128xf32>
    %cst_16 = arith.constant 1.000000e+00 : f32
    %36 = vector.broadcast %cst_16 : f32 to vector<16x128xf32>
    %37 = arith.addf %36, %35 : vector<16x128xf32>
    %38 = arith.mulf %32, %37 : vector<16x128xf32>
    %39 = arith.truncf %38 : vector<16x128xf32> to vector<16x128xbf16>
    %c0_17 = arith.constant 0 : index
    %c0_18 = arith.constant 0 : index
    %40 = vector.load %arg6[%c0_17, %c0_18] : memref<128x32xbf16, #tpu.memory_space<vmem>>, vector<128x32xbf16>
    %cst_19 = arith.constant dense<0.000000e+00> : vector<16x32xf32>
    %41 = tpu.matmul %39, %40, %cst_19 {dimension_numbers = #tpu.dot_dimension_numbers<[1], [0], [0], [1], [0, 0, 1, 1], [], []>} : vector<16x128xbf16>, vector<128x32xbf16>, vector<16x32xf32> -> vector<16x32xf32>
    %42 = arith.addf %0, %41 : vector<16x32xf32>
    %c0_20 = arith.constant 0 : index
    %c0_21 = arith.constant 0 : index
    %43 = vector.load %arg7[%c0_20, %c0_21] : memref<1x32xf32, #tpu.memory_space<vmem>>, vector<1x32xf32>
    %44 = vector.broadcast %43 : vector<1x32xf32> to vector<16x32xf32>
    %45 = arith.addf %42, %44 : vector<16x32xf32>
    %c0_22 = arith.constant 0 : index
    %c0_23 = arith.constant 0 : index
    %46 = vector.load %arg8[%c0_22, %c0_23] : memref<16x32xf32, #tpu.memory_space<vmem>>, vector<16x32xf32>
    tpu.vector_store %arg8[%c0_22, %c0_23], %45 {strides = array<i32>} : memref<16x32xf32, #tpu.memory_space<vmem>>, vector<16x32xf32>,
    return
  }
  func.func @transform_0(%arg0: i32) -> (i32, i32) {
    %c0_i32 = arith.constant 0 : i32
    %c0_i32_0 = arith.constant 0 : i32
    return %arg0, %c0_i32 : i32, i32
  }
  func.func @transform_1(%arg0: i32) -> (i32, i32) {
    %c0_i32 = arith.constant 0 : i32
    %c0_i32_0 = arith.constant 0 : i32
    %c0_i32_1 = arith.constant 0 : i32
    return %c0_i32, %c0_i32_0 : i32, i32
  }
  func.func @transform_2(%arg0: i32) -> (i32, i32) {
    %c0_i32 = arith.constant 0 : i32
    %c0_i32_0 = arith.constant 0 : i32
    %c0_i32_1 = arith.constant 0 : i32
    return %c0_i32, %c0_i32_0 : i32, i32
  }
  func.func @transform_3(%arg0: i32) -> (i32, i32) {
    %c0_i32 = arith.constant 0 : i32
    %c0_i32_0 = arith.constant 0 : i32
    %c0_i32_1 = arith.constant 0 : i32
    return %c0_i32, %c0_i32_0 : i32, i32
  }
  func.func @transform_4(%arg0: i32) -> (i32, i32) {
    %c0_i32 = arith.constant 0 : i32
    %c0_i32_0 = arith.constant 0 : i32
    %c0_i32_1 = arith.constant 0 : i32
    return %c0_i32, %c0_i32_0 : i32, i32
  }
  func.func @transform_5(%arg0: i32) -> (i32, i32) {
    %c0_i32 = arith.constant 0 : i32
    %c0_i32_0 = arith.constant 0 : i32
    %c0_i32_1 = arith.constant 0 : i32
    return %c0_i32, %c0_i32_0 : i32, i32
  }
  func.func @transform_6(%arg0: i32) -> (i32, i32) {
    %c0_i32 = arith.constant 0 : i32
    %c0_i32_0 = arith.constant 0 : i32
    %c0_i32_1 = arith.constant 0 : i32
    return %c0_i32, %c0_i32_0 : i32, i32
  }
  func.func @transform_7(%arg0: i32) -> (i32, i32) {
    %c0_i32 = arith.constant 0 : i32
    %c0_i32_0 = arith.constant 0 : i32
    return %arg0, %c0_i32 : i32, i32
  }
}

module attributes {stable_mosaic.version = 11 : i64} {
  func.func @_attn_proj_kernel(%arg0: i32, %arg1: memref<1x8x96xbf16, #tpu.memory_space<vmem>>, %arg2: memref<1x8x32xf32, #tpu.memory_space<vmem>>, %arg3: memref<32x32xbf16, #tpu.memory_space<vmem>>, %arg4: memref<1x32xf32, #tpu.memory_space<vmem>>, %arg5: memref<1x8x32xf32, #tpu.memory_space<vmem>>, %arg6: memref<1x4x8x8xbf16, #tpu.memory_space<vmem>>) attributes {dimension_semantics = [#tpu.dimension_semantics<parallel>], iteration_bounds = array<i64: 2>, scalar_prefetch = 0 : i64, scratch_operands = 0 : i64, tpu.core_type = #tpu.core_type<tc>, window_params = [{transform_indices = @transform_0, window_bounds = array<i64: 1, 8, 96>}, {transform_indices = @transform_1, window_bounds = array<i64: 1, 8, 32>}, {pipeline_mode = #tpu.pipeline_mode<synchronous>, transform_indices = @transform_2, window_bounds = array<i64: 32, 32>}, {pipeline_mode = #tpu.pipeline_mode<synchronous>, transform_indices = @transform_3, window_bounds = array<i64: 1, 32>}, {transform_indices = @transform_4, window_bounds = array<i64: 1, 8, 32>}, {transform_indices = @transform_5, window_bounds = array<i64: 1, 4, 8, 8>}]} {
    %c0 = arith.constant 0 : index
    %c0_0 = arith.constant 0 : index
    %c0_1 = arith.constant 0 : index
    %0 = vector.load %arg1[%c0, %c0_0, %c0_1] : memref<1x8x96xbf16, #tpu.memory_space<vmem>>, vector<1x8x96xbf16>
    %1 = vector.shape_cast %0 : vector<1x8x96xbf16> to vector<8x96xbf16>
    %c0_2 = arith.constant 0 : index
    %c0_3 = arith.constant 0 : index
    %c0_4 = arith.constant 0 : index
    %2 = vector.load %arg2[%c0_2, %c0_3, %c0_4] : memref<1x8x32xf32, #tpu.memory_space<vmem>>, vector<1x8x32xf32>
    %3 = vector.shape_cast %2 : vector<1x8x32xf32> to vector<8x32xf32>
    %4 = tpu.iota {dimensions = array<i32: 0>} : vector<8x8xi32>
    %5 = tpu.iota {dimensions = array<i32: 1>} : vector<8x8xi32>
    %6 = arith.cmpi sle, %5, %4 : vector<8x8xi32>
    %7 = vector.extract_strided_slice %1 {offsets = [0, 0], sizes = [8, 8], strides = [1, 1]} : vector<8x96xbf16> to vector<8x8xbf16>
    %cst = arith.constant 3.535160e-01 : bf16
    %8 = vector.broadcast %cst : bf16 to vector<8x8xbf16>
    %9 = arith.mulf %7, %8 : vector<8x8xbf16>
    %10 = vector.extract_strided_slice %1 {offsets = [0, 32], sizes = [8, 8], strides = [1, 1]} : vector<8x96xbf16> to vector<8x8xbf16>
    %11 = vector.extract_strided_slice %1 {offsets = [0, 64], sizes = [8, 8], strides = [1, 1]} : vector<8x96xbf16> to vector<8x8xbf16>
    %cst_5 = arith.constant dense<0.000000e+00> : vector<8x8xf32>
    %12 = tpu.matmul %9, %10, %cst_5 {dimension_numbers = #tpu.dot_dimension_numbers<[1], [1], [0], [0], [0, 0, 1, 0], [], []>} : vector<8x8xbf16>, vector<8x8xbf16>, vector<8x8xf32> -> vector<8x8xf32>
    %cst_6 = arith.constant 0xFF800000 : f32
    %13 = vector.broadcast %cst_6 : f32 to vector<8x8xf32>
    %14 = arith.select %6, %12, %13 : vector<8x8xi1>, vector<8x8xf32>
    %cst_7 = arith.constant dense<0xFF800000> : vector<8xf32>
    %15 = vector.multi_reduction <maximumf>, %14, %cst_7 [1] : vector<8x8xf32> to vector<8xf32>
    %16 = vector.shape_cast %15 : vector<8xf32> to vector<8x1xf32>
    %17 = vector.broadcast %16 : vector<8x1xf32> to vector<8x8xf32>
    %18 = arith.subf %14, %17 : vector<8x8xf32>
    %19 = math.exp %18 : vector<8x8xf32>
    %cst_8 = arith.constant dense<0.000000e+00> : vector<8xf32>
    %20 = vector.multi_reduction <add>, %19, %cst_8 [1] : vector<8x8xf32> to vector<8xf32>
    %21 = vector.shape_cast %20 : vector<8xf32> to vector<8x1xf32>
    %22 = tpu.reciprocal %21 {approx = true} : vector<8x1xf32> -> vector<8x1xf32>
    %23 = vector.broadcast %22 : vector<8x1xf32> to vector<8x8xf32>
    %24 = arith.mulf %19, %23 : vector<8x8xf32>
    %25 = arith.truncf %24 : vector<8x8xf32> to vector<8x8xbf16>
    %c0_9 = arith.constant 0 : index
    %c0_10 = arith.constant 0 : index
    %c0_11 = arith.constant 0 : index
    %c0_12 = arith.constant 0 : index
    %26 = vector.load %arg6[%c0_9, %c0_10, %c0_11, %c0_12] : memref<1x4x8x8xbf16, #tpu.memory_space<vmem>>, vector<1x1x8x8xbf16>
    %27 = vector.shape_cast %26 : vector<1x1x8x8xbf16> to vector<8x8xbf16>
    %28 = vector.shape_cast %25 : vector<8x8xbf16> to vector<1x1x8x8xbf16>
    tpu.vector_store %arg6[%c0_9, %c0_10, %c0_11, %c0_12], %28 {strides = array<i32>} : memref<1x4x8x8xbf16, #tpu.memory_space<vmem>>, vector<1x1x8x8xbf16>,
    %29 = arith.truncf %24 : vector<8x8xf32> to vector<8x8xbf16>
    %cst_13 = arith.constant dense<0.000000e+00> : vector<8x8xf32>
    %30 = tpu.matmul %29, %11, %cst_13 {dimension_numbers = #tpu.dot_dimension_numbers<[1], [0], [0], [1], [0, 0, 1, 1], [], []>} : vector<8x8xbf16>, vector<8x8xbf16>, vector<8x8xf32> -> vector<8x8xf32>
    %31 = vector.extract_strided_slice %1 {offsets = [0, 8], sizes = [8, 8], strides = [1, 1]} : vector<8x96xbf16> to vector<8x8xbf16>
    %cst_14 = arith.constant 3.535160e-01 : bf16
    %32 = vector.broadcast %cst_14 : bf16 to vector<8x8xbf16>
    %33 = arith.mulf %31, %32 : vector<8x8xbf16>
    %34 = vector.extract_strided_slice %1 {offsets = [0, 40], sizes = [8, 8], strides = [1, 1]} : vector<8x96xbf16> to vector<8x8xbf16>
    %35 = vector.extract_strided_slice %1 {offsets = [0, 72], sizes = [8, 8], strides = [1, 1]} : vector<8x96xbf16> to vector<8x8xbf16>
    %cst_15 = arith.constant dense<0.000000e+00> : vector<8x8xf32>
    %36 = tpu.matmul %33, %34, %cst_15 {dimension_numbers = #tpu.dot_dimension_numbers<[1], [1], [0], [0], [0, 0, 1, 0], [], []>} : vector<8x8xbf16>, vector<8x8xbf16>, vector<8x8xf32> -> vector<8x8xf32>
    %cst_16 = arith.constant 0xFF800000 : f32
    %37 = vector.broadcast %cst_16 : f32 to vector<8x8xf32>
    %38 = arith.select %6, %36, %37 : vector<8x8xi1>, vector<8x8xf32>
    %cst_17 = arith.constant dense<0xFF800000> : vector<8xf32>
    %39 = vector.multi_reduction <maximumf>, %38, %cst_17 [1] : vector<8x8xf32> to vector<8xf32>
    %40 = vector.shape_cast %39 : vector<8xf32> to vector<8x1xf32>
    %41 = vector.broadcast %40 : vector<8x1xf32> to vector<8x8xf32>
    %42 = arith.subf %38, %41 : vector<8x8xf32>
    %43 = math.exp %42 : vector<8x8xf32>
    %cst_18 = arith.constant dense<0.000000e+00> : vector<8xf32>
    %44 = vector.multi_reduction <add>, %43, %cst_18 [1] : vector<8x8xf32> to vector<8xf32>
    %45 = vector.shape_cast %44 : vector<8xf32> to vector<8x1xf32>
    %46 = tpu.reciprocal %45 {approx = true} : vector<8x1xf32> -> vector<8x1xf32>
    %47 = vector.broadcast %46 : vector<8x1xf32> to vector<8x8xf32>
    %48 = arith.mulf %43, %47 : vector<8x8xf32>
    %49 = arith.truncf %48 : vector<8x8xf32> to vector<8x8xbf16>
    %c0_19 = arith.constant 0 : index
    %c1 = arith.constant 1 : index
    %c0_20 = arith.constant 0 : index
    %c0_21 = arith.constant 0 : index
    %50 = vector.load %arg6[%c0_19, %c1, %c0_20, %c0_21] : memref<1x4x8x8xbf16, #tpu.memory_space<vmem>>, vector<1x1x8x8xbf16>
    %51 = vector.shape_cast %50 : vector<1x1x8x8xbf16> to vector<8x8xbf16>
    %52 = vector.shape_cast %49 : vector<8x8xbf16> to vector<1x1x8x8xbf16>
    tpu.vector_store %arg6[%c0_19, %c1, %c0_20, %c0_21], %52 {strides = array<i32>} : memref<1x4x8x8xbf16, #tpu.memory_space<vmem>>, vector<1x1x8x8xbf16>,
    %53 = arith.truncf %48 : vector<8x8xf32> to vector<8x8xbf16>
    %cst_22 = arith.constant dense<0.000000e+00> : vector<8x8xf32>
    %54 = tpu.matmul %53, %35, %cst_22 {dimension_numbers = #tpu.dot_dimension_numbers<[1], [0], [0], [1], [0, 0, 1, 1], [], []>} : vector<8x8xbf16>, vector<8x8xbf16>, vector<8x8xf32> -> vector<8x8xf32>
    %55 = vector.extract_strided_slice %1 {offsets = [0, 16], sizes = [8, 8], strides = [1, 1]} : vector<8x96xbf16> to vector<8x8xbf16>
    %cst_23 = arith.constant 3.535160e-01 : bf16
    %56 = vector.broadcast %cst_23 : bf16 to vector<8x8xbf16>
    %57 = arith.mulf %55, %56 : vector<8x8xbf16>
    %58 = vector.extract_strided_slice %1 {offsets = [0, 48], sizes = [8, 8], strides = [1, 1]} : vector<8x96xbf16> to vector<8x8xbf16>
    %59 = vector.extract_strided_slice %1 {offsets = [0, 80], sizes = [8, 8], strides = [1, 1]} : vector<8x96xbf16> to vector<8x8xbf16>
    %cst_24 = arith.constant dense<0.000000e+00> : vector<8x8xf32>
    %60 = tpu.matmul %57, %58, %cst_24 {dimension_numbers = #tpu.dot_dimension_numbers<[1], [1], [0], [0], [0, 0, 1, 0], [], []>} : vector<8x8xbf16>, vector<8x8xbf16>, vector<8x8xf32> -> vector<8x8xf32>
    %cst_25 = arith.constant 0xFF800000 : f32
    %61 = vector.broadcast %cst_25 : f32 to vector<8x8xf32>
    %62 = arith.select %6, %60, %61 : vector<8x8xi1>, vector<8x8xf32>
    %cst_26 = arith.constant dense<0xFF800000> : vector<8xf32>
    %63 = vector.multi_reduction <maximumf>, %62, %cst_26 [1] : vector<8x8xf32> to vector<8xf32>
    %64 = vector.shape_cast %63 : vector<8xf32> to vector<8x1xf32>
    %65 = vector.broadcast %64 : vector<8x1xf32> to vector<8x8xf32>
    %66 = arith.subf %62, %65 : vector<8x8xf32>
    %67 = math.exp %66 : vector<8x8xf32>
    %cst_27 = arith.constant dense<0.000000e+00> : vector<8xf32>
    %68 = vector.multi_reduction <add>, %67, %cst_27 [1] : vector<8x8xf32> to vector<8xf32>
    %69 = vector.shape_cast %68 : vector<8xf32> to vector<8x1xf32>
    %70 = tpu.reciprocal %69 {approx = true} : vector<8x1xf32> -> vector<8x1xf32>
    %71 = vector.broadcast %70 : vector<8x1xf32> to vector<8x8xf32>
    %72 = arith.mulf %67, %71 : vector<8x8xf32>
    %73 = arith.truncf %72 : vector<8x8xf32> to vector<8x8xbf16>
    %c0_28 = arith.constant 0 : index
    %c2 = arith.constant 2 : index
    %c0_29 = arith.constant 0 : index
    %c0_30 = arith.constant 0 : index
    %74 = vector.load %arg6[%c0_28, %c2, %c0_29, %c0_30] : memref<1x4x8x8xbf16, #tpu.memory_space<vmem>>, vector<1x1x8x8xbf16>
    %75 = vector.shape_cast %74 : vector<1x1x8x8xbf16> to vector<8x8xbf16>
    %76 = vector.shape_cast %73 : vector<8x8xbf16> to vector<1x1x8x8xbf16>
    tpu.vector_store %arg6[%c0_28, %c2, %c0_29, %c0_30], %76 {strides = array<i32>} : memref<1x4x8x8xbf16, #tpu.memory_space<vmem>>, vector<1x1x8x8xbf16>,
    %77 = arith.truncf %72 : vector<8x8xf32> to vector<8x8xbf16>
    %cst_31 = arith.constant dense<0.000000e+00> : vector<8x8xf32>
    %78 = tpu.matmul %77, %59, %cst_31 {dimension_numbers = #tpu.dot_dimension_numbers<[1], [0], [0], [1], [0, 0, 1, 1], [], []>} : vector<8x8xbf16>, vector<8x8xbf16>, vector<8x8xf32> -> vector<8x8xf32>
    %79 = vector.extract_strided_slice %1 {offsets = [0, 24], sizes = [8, 8], strides = [1, 1]} : vector<8x96xbf16> to vector<8x8xbf16>
    %cst_32 = arith.constant 3.535160e-01 : bf16
    %80 = vector.broadcast %cst_32 : bf16 to vector<8x8xbf16>
    %81 = arith.mulf %79, %80 : vector<8x8xbf16>
    %82 = vector.extract_strided_slice %1 {offsets = [0, 56], sizes = [8, 8], strides = [1, 1]} : vector<8x96xbf16> to vector<8x8xbf16>
    %83 = vector.extract_strided_slice %1 {offsets = [0, 88], sizes = [8, 8], strides = [1, 1]} : vector<8x96xbf16> to vector<8x8xbf16>
    %cst_33 = arith.constant dense<0.000000e+00> : vector<8x8xf32>
    %84 = tpu.matmul %81, %82, %cst_33 {dimension_numbers = #tpu.dot_dimension_numbers<[1], [1], [0], [0], [0, 0, 1, 0], [], []>} : vector<8x8xbf16>, vector<8x8xbf16>, vector<8x8xf32> -> vector<8x8xf32>
    %cst_34 = arith.constant 0xFF800000 : f32
    %85 = vector.broadcast %cst_34 : f32 to vector<8x8xf32>
    %86 = arith.select %6, %84, %85 : vector<8x8xi1>, vector<8x8xf32>
    %cst_35 = arith.constant dense<0xFF800000> : vector<8xf32>
    %87 = vector.multi_reduction <maximumf>, %86, %cst_35 [1] : vector<8x8xf32> to vector<8xf32>
    %88 = vector.shape_cast %87 : vector<8xf32> to vector<8x1xf32>
    %89 = vector.broadcast %88 : vector<8x1xf32> to vector<8x8xf32>
    %90 = arith.subf %86, %89 : vector<8x8xf32>
    %91 = math.exp %90 : vector<8x8xf32>
    %cst_36 = arith.constant dense<0.000000e+00> : vector<8xf32>
    %92 = vector.multi_reduction <add>, %91, %cst_36 [1] : vector<8x8xf32> to vector<8xf32>
    %93 = vector.shape_cast %92 : vector<8xf32> to vector<8x1xf32>
    %94 = tpu.reciprocal %93 {approx = true} : vector<8x1xf32> -> vector<8x1xf32>
    %95 = vector.broadcast %94 : vector<8x1xf32> to vector<8x8xf32>
    %96 = arith.mulf %91, %95 : vector<8x8xf32>
    %97 = arith.truncf %96 : vector<8x8xf32> to vector<8x8xbf16>
    %c0_37 = arith.constant 0 : index
    %c3 = arith.constant 3 : index
    %c0_38 = arith.constant 0 : index
    %c0_39 = arith.constant 0 : index
    %98 = vector.load %arg6[%c0_37, %c3, %c0_38, %c0_39] : memref<1x4x8x8xbf16, #tpu.memory_space<vmem>>, vector<1x1x8x8xbf16>
    %99 = vector.shape_cast %98 : vector<1x1x8x8xbf16> to vector<8x8xbf16>
    %100 = vector.shape_cast %97 : vector<8x8xbf16> to vector<1x1x8x8xbf16>
    tpu.vector_store %arg6[%c0_37, %c3, %c0_38, %c0_39], %100 {strides = array<i32>} : memref<1x4x8x8xbf16, #tpu.memory_space<vmem>>, vector<1x1x8x8xbf16>,
    %101 = arith.truncf %96 : vector<8x8xf32> to vector<8x8xbf16>
    %cst_40 = arith.constant dense<0.000000e+00> : vector<8x8xf32>
    %102 = tpu.matmul %101, %83, %cst_40 {dimension_numbers = #tpu.dot_dimension_numbers<[1], [0], [0], [1], [0, 0, 1, 1], [], []>} : vector<8x8xbf16>, vector<8x8xbf16>, vector<8x8xf32> -> vector<8x8xf32>
    %103 = tpu.concatenate %30, %54, %78, %102 in 1 : vector<8x8xf32>, vector<8x8xf32>, vector<8x8xf32>, vector<8x8xf32> -> vector<8x32xf32>
    %104 = arith.truncf %103 : vector<8x32xf32> to vector<8x32xbf16>
    %c0_41 = arith.constant 0 : index
    %c0_42 = arith.constant 0 : index
    %105 = vector.load %arg3[%c0_41, %c0_42] : memref<32x32xbf16, #tpu.memory_space<vmem>>, vector<32x32xbf16>
    %cst_43 = arith.constant dense<0.000000e+00> : vector<8x32xf32>
    %106 = tpu.matmul %104, %105, %cst_43 {dimension_numbers = #tpu.dot_dimension_numbers<[1], [0], [0], [1], [0, 0, 1, 1], [], []>} : vector<8x32xbf16>, vector<32x32xbf16>, vector<8x32xf32> -> vector<8x32xf32>
    %107 = arith.addf %3, %106 : vector<8x32xf32>
    %c0_44 = arith.constant 0 : index
    %c0_45 = arith.constant 0 : index
    %108 = vector.load %arg4[%c0_44, %c0_45] : memref<1x32xf32, #tpu.memory_space<vmem>>, vector<1x32xf32>
    %109 = vector.broadcast %108 : vector<1x32xf32> to vector<8x32xf32>
    %110 = arith.addf %107, %109 : vector<8x32xf32>
    %c0_46 = arith.constant 0 : index
    %c0_47 = arith.constant 0 : index
    %c0_48 = arith.constant 0 : index
    %111 = vector.load %arg5[%c0_46, %c0_47, %c0_48] : memref<1x8x32xf32, #tpu.memory_space<vmem>>, vector<1x8x32xf32>
    %112 = vector.shape_cast %111 : vector<1x8x32xf32> to vector<8x32xf32>
    %113 = vector.shape_cast %110 : vector<8x32xf32> to vector<1x8x32xf32>
    tpu.vector_store %arg5[%c0_46, %c0_47, %c0_48], %113 {strides = array<i32>} : memref<1x8x32xf32, #tpu.memory_space<vmem>>, vector<1x8x32xf32>,
    return
  }
  func.func @transform_0(%arg0: i32) -> (i32, i32, i32) {
    %c0_i32 = arith.constant 0 : i32
    %c0_i32_0 = arith.constant 0 : i32
    %c0_i32_1 = arith.constant 0 : i32
    return %arg0, %c0_i32, %c0_i32_0 : i32, i32, i32
  }
  func.func @transform_1(%arg0: i32) -> (i32, i32, i32) {
    %c0_i32 = arith.constant 0 : i32
    %c0_i32_0 = arith.constant 0 : i32
    %c0_i32_1 = arith.constant 0 : i32
    return %arg0, %c0_i32, %c0_i32_0 : i32, i32, i32
  }
  func.func @transform_2(%arg0: i32) -> (i32, i32) {
    %c0_i32 = arith.constant 0 : i32
    %c0_i32_0 = arith.constant 0 : i32
    %c0_i32_1 = arith.constant 0 : i32
    return %c0_i32, %c0_i32_0 : i32, i32
  }
  func.func @transform_3(%arg0: i32) -> (i32, i32) {
    %c0_i32 = arith.constant 0 : i32
    %c0_i32_0 = arith.constant 0 : i32
    %c0_i32_1 = arith.constant 0 : i32
    return %c0_i32, %c0_i32_0 : i32, i32
  }
  func.func @transform_4(%arg0: i32) -> (i32, i32, i32) {
    %c0_i32 = arith.constant 0 : i32
    %c0_i32_0 = arith.constant 0 : i32
    %c0_i32_1 = arith.constant 0 : i32
    return %arg0, %c0_i32, %c0_i32_0 : i32, i32, i32
  }
  func.func @transform_5(%arg0: i32) -> (i32, i32, i32, i32) {
    %c0_i32 = arith.constant 0 : i32
    %c0_i32_0 = arith.constant 0 : i32
    %c0_i32_1 = arith.constant 0 : i32
    %c0_i32_2 = arith.constant 0 : i32
    return %arg0, %c0_i32, %c0_i32_0, %c0_i32_1 : i32, i32, i32, i32
  }
}

module attributes {stable_mosaic.version = 11 : i64} {
  func.func @_ln_head_kernel(%arg0: i32, %arg1: i32, %arg2: memref<16x32xf32, #tpu.memory_space<vmem>>, %arg3: memref<1x32xf32, #tpu.memory_space<vmem>>, %arg4: memref<1x32xf32, #tpu.memory_space<vmem>>, %arg5: memref<32x128xbf16, #tpu.memory_space<vmem>>, %arg6: memref<16x128xf32, #tpu.memory_space<vmem>>) attributes {dimension_semantics = [#tpu.dimension_semantics<parallel>, #tpu.dimension_semantics<parallel>], iteration_bounds = array<i64: 1, 1>, scalar_prefetch = 0 : i64, scratch_operands = 0 : i64, tpu.core_type = #tpu.core_type<tc>, window_params = [{transform_indices = @transform_0, window_bounds = array<i64: 16, 32>}, {pipeline_mode = #tpu.pipeline_mode<synchronous>, transform_indices = @transform_1, window_bounds = array<i64: 1, 32>}, {pipeline_mode = #tpu.pipeline_mode<synchronous>, transform_indices = @transform_2, window_bounds = array<i64: 1, 32>}, {transform_indices = @transform_3, window_bounds = array<i64: 32, 128>}, {transform_indices = @transform_4, window_bounds = array<i64: 16, 128>}]} {
    %c0 = arith.constant 0 : index
    %c0_0 = arith.constant 0 : index
    %0 = vector.load %arg2[%c0, %c0_0] : memref<16x32xf32, #tpu.memory_space<vmem>>, vector<16x32xf32>
    %c0_1 = arith.constant 0 : index
    %c0_2 = arith.constant 0 : index
    %1 = vector.load %arg3[%c0_1, %c0_2] : memref<1x32xf32, #tpu.memory_space<vmem>>, vector<1x32xf32>
    %c0_3 = arith.constant 0 : index
    %c0_4 = arith.constant 0 : index
    %2 = vector.load %arg4[%c0_3, %c0_4] : memref<1x32xf32, #tpu.memory_space<vmem>>, vector<1x32xf32>
    %cst = arith.constant dense<0.000000e+00> : vector<16xf32>
    %3 = vector.multi_reduction <add>, %0, %cst [1] : vector<16x32xf32> to vector<16xf32>
    %4 = vector.shape_cast %3 : vector<16xf32> to vector<16x1xf32>
    %cst_5 = arith.constant 3.200000e+01 : f32
    %5 = vector.broadcast %cst_5 : f32 to vector<16x1xf32>
    %6 = arith.divf %4, %5 : vector<16x1xf32>
    %7 = vector.broadcast %6 : vector<16x1xf32> to vector<16x32xf32>
    %8 = arith.subf %0, %7 : vector<16x32xf32>
    %9 = arith.mulf %8, %8 : vector<16x32xf32>
    %cst_6 = arith.constant dense<0.000000e+00> : vector<16xf32>
    %10 = vector.multi_reduction <add>, %9, %cst_6 [1] : vector<16x32xf32> to vector<16xf32>
    %11 = vector.shape_cast %10 : vector<16xf32> to vector<16x1xf32>
    %cst_7 = arith.constant 3.200000e+01 : f32
    %12 = vector.broadcast %cst_7 : f32 to vector<16x1xf32>
    %13 = arith.divf %11, %12 : vector<16x1xf32>
    %14 = vector.broadcast %6 : vector<16x1xf32> to vector<16x32xf32>
    %15 = arith.subf %0, %14 : vector<16x32xf32>
    %cst_8 = arith.constant 9.99999974E-6 : f32
    %16 = vector.broadcast %cst_8 : f32 to vector<16x1xf32>
    %17 = arith.addf %13, %16 : vector<16x1xf32>
    %18 = math.rsqrt %17 : vector<16x1xf32>
    %19 = vector.broadcast %18 : vector<16x1xf32> to vector<16x32xf32>
    %20 = arith.mulf %15, %19 : vector<16x32xf32>
    %21 = vector.broadcast %1 : vector<1x32xf32> to vector<16x32xf32>
    %22 = arith.mulf %20, %21 : vector<16x32xf32>
    %23 = vector.broadcast %2 : vector<1x32xf32> to vector<16x32xf32>
    %24 = arith.addf %22, %23 : vector<16x32xf32>
    %25 = arith.truncf %24 : vector<16x32xf32> to vector<16x32xbf16>
    %c0_9 = arith.constant 0 : index
    %c0_10 = arith.constant 0 : index
    %26 = vector.load %arg5[%c0_9, %c0_10] : memref<32x128xbf16, #tpu.memory_space<vmem>>, vector<32x128xbf16>
    %cst_11 = arith.constant dense<0.000000e+00> : vector<16x128xf32>
    %27 = tpu.matmul %25, %26, %cst_11 {dimension_numbers = #tpu.dot_dimension_numbers<[1], [0], [0], [1], [0, 0, 1, 1], [], []>} : vector<16x32xbf16>, vector<32x128xbf16>, vector<16x128xf32> -> vector<16x128xf32>
    %c0_12 = arith.constant 0 : index
    %c0_13 = arith.constant 0 : index
    %28 = vector.load %arg6[%c0_12, %c0_13] : memref<16x128xf32, #tpu.memory_space<vmem>>, vector<16x128xf32>
    tpu.vector_store %arg6[%c0_12, %c0_13], %27 {strides = array<i32>} : memref<16x128xf32, #tpu.memory_space<vmem>>, vector<16x128xf32>,
    return
  }
  func.func @transform_0(%arg0: i32, %arg1: i32) -> (i32, i32) {
    %c0_i32 = arith.constant 0 : i32
    %c0_i32_0 = arith.constant 0 : i32
    return %arg0, %c0_i32 : i32, i32
  }
  func.func @transform_1(%arg0: i32, %arg1: i32) -> (i32, i32) {
    %c0_i32 = arith.constant 0 : i32
    %c0_i32_0 = arith.constant 0 : i32
    %c0_i32_1 = arith.constant 0 : i32
    return %c0_i32, %c0_i32_0 : i32, i32
  }
  func.func @transform_2(%arg0: i32, %arg1: i32) -> (i32, i32) {
    %c0_i32 = arith.constant 0 : i32
    %c0_i32_0 = arith.constant 0 : i32
    %c0_i32_1 = arith.constant 0 : i32
    return %c0_i32, %c0_i32_0 : i32, i32
  }
  func.func @transform_3(%arg0: i32, %arg1: i32) -> (i32, i32) {
    %c0_i32 = arith.constant 0 : i32
    %c0_i32_0 = arith.constant 0 : i32
    return %c0_i32, %arg1 : i32, i32
  }
  func.func @transform_4(%arg0: i32, %arg1: i32) -> (i32, i32) {
    %c0_i32 = arith.constant 0 : i32
    return %arg0, %arg1 : i32, i32
  }
}

</mosaic_0001>

<llo_original>
// kernel: gpt_forward.13
$region0: #{gpt_forward.13}
  #allocation0 [shape = 'u32[]', space=smem, size = 0x4, offset = 0x4, fixed_abs, tag = 'smem constant byte address 0x4 - core index']
  #allocation1 [shape = 'u32[144,128]{1,0:T(1,128)}', space=vmem, size = 0x12000, scoped, tag = 'internal scratch']
  %s0 = inlined_call_operand.hbm [shape: f32[16,32], index: 0, kind: input, shape index: {}]
  %s1 = inlined_call_operand.hbm [shape: f32[1,32], index: 1, kind: input, shape index: {}]
  %s2 = inlined_call_operand.hbm [shape: f32[1,32], index: 2, kind: input, shape index: {}]
  %s3 = inlined_call_operand.hbm [shape: bf16[32,128], index: 3, kind: input, shape index: {}]
  %s4 = inlined_call_operand.hbm [shape: f32[16,128], index: 4, kind: output, shape index: {}]
  %s5 = sld [smem:[#allocation0]]
  $region42: #{gpt_forward.13} parent=0
    _
  %s7 = ssub.s32 1, %s5
  %s8 = scalar_select 0, %s7, %s5
  $region1: #{gpt_forward.13} parent=0
    #allocation2 [shape = 'u8[8192]{0}', space=vmem, size = 0x2000, scoped, tag = 'input window, operand 0, single buffered']
    #allocation3 [shape = 's32[1]{0}', space=sflag, size = 0x4, scoped, tag = 'scoped memory for gpt_forward.13']
    #allocation4 [shape = 's32[1]{0}', space=sflag, size = 0x4, scoped, tag = 'scoped memory for gpt_forward.13']
    #allocation5 [shape = 'u8[512]{0}', space=vmem, size = 0x400, scoped, tag = 'input window, operand 1, single buffered']
    #allocation6 [shape = 's32[1]{0}', space=sflag, size = 0x4, scoped, tag = 'scoped memory for gpt_forward.13']
    #allocation7 [shape = 'u8[512]{0}', space=vmem, size = 0x400, scoped, tag = 'input window, operand 2, single buffered']
    #allocation8 [shape = 'u8[8192]{0}', space=vmem, size = 0x2000, scoped, tag = 'input window, operand 3, single buffered']
    #allocation9 [shape = 's32[1]{0}', space=sflag, size = 0x4, scoped, tag = 'scoped memory for gpt_forward.13']
    #allocation10 [shape = 'u8[8192]{0}', space=vmem, size = 0x2000, scoped, tag = 'output window, operand 0, single buffered']
    %9 = vsyncpa [#allocation3], 0
    %10 = vsyncpa [#allocation6], 0
    %11 = vsyncpa [#allocation9], 0
    %12 = vsyncpa [#allocation4], 0
    // Predicated region
    $region2: #{gpt_forward.13} parent=1 // pred_check
      _
    $region3: #{gpt_forward.13} parent=1 // pred_check_branch
      %14 = sbr.rel (0) target = $region5
    $region4: #{gpt_forward.13} parent=1 // pred_region
      %s16 = ssub.s32 256, 256
      %17 = vsyncadd [#allocation3], %s16
      %s18 = sshll.u32 [#allocation2], 4
      %s19 = int_to_ptr.vmem [resolvable:$true] %s18
      %24 = dma.hbm_to_vmem [thread:$0]  %s0, 256, %s19, [#allocation3], 128, 128, 8
    $region5: #{gpt_forward.13} parent=1 // pred_fallthru
      _
    // Predicated region
    $region6: #{gpt_forward.13} parent=1 // pred_check
      _
    $region7: #{gpt_forward.13} parent=1 // pred_check_branch
      %26 = sbr.rel (0) target = $region9
    $region8: #{gpt_forward.13} parent=1 // pred_region
      %s28 = ssub.s32 16, 16
      %29 = vsyncadd [#allocation6], %s28
      %s31 = sshll.u32 [#allocation5], 4
      %s32 = int_to_ptr.vmem [resolvable:$true] %s31
      %34 = dma.hbm_to_vmem [thread:$0]  %s1, 16, %s32, [#allocation6]
    $region9: #{gpt_forward.13} parent=1 // pred_fallthru
      _
    // Predicated region
    $region10: #{gpt_forward.13} parent=1 // pred_check
      _
    $region11: #{gpt_forward.13} parent=1 // pred_check_branch
      %36 = sbr.rel (0) target = $region13
    $region12: #{gpt_forward.13} parent=1 // pred_region
      %s38 = ssub.s32 16, 16
      %39 = vsyncadd [#allocation6], %s38
      %s41 = sshll.u32 [#allocation7], 4
      %s42 = int_to_ptr.vmem [resolvable:$true] %s41
      %44 = dma.hbm_to_vmem [thread:$0]  %s2, 16, %s42, [#allocation6]
    $region13: #{gpt_forward.13} parent=1 // pred_fallthru
      _
    // Predicated region
    $region14: #{gpt_forward.13} parent=1 // pred_check
      _
    $region15: #{gpt_forward.13} parent=1 // pred_check_branch
      %46 = sbr.rel (0) target = $region17
    $region16: #{gpt_forward.13} parent=1 // pred_region
      %s48 = ssub.s32 256, 256
      %49 = vsyncadd [#allocation9], %s48
      %s50 = sshll.u32 [#allocation8], 4
      %s51 = int_to_ptr.vmem [resolvable:$true] %s50
      %56 = dma.hbm_to_vmem [thread:$0]  %s3, 256, %s51, [#allocation9], 64, 64, 4
    $region17: #{gpt_forward.13} parent=1 // pred_fallthru
      _
    // Predicated region
    $region18: #{gpt_forward.13} parent=1 // pred_check
      _
    $region19: #{gpt_forward.13} parent=1 // pred_check_branch
      %58 = sbr.rel (0) target = $region21
    $region20: #{gpt_forward.13} parent=1 // pred_region
      %59 = dma.done [#allocation3], 256
    $region21: #{gpt_forward.13} parent=1 // pred_fallthru
      _
    // Predicated region
    $region22: #{gpt_forward.13} parent=1 // pred_check
      _
    $region23: #{gpt_forward.13} parent=1 // pred_check_branch
      %61 = sbr.rel (0) target = $region25
    $region24: #{gpt_forward.13} parent=1 // pred_region
      %62 = dma.done [#allocation6], 16
    $region25: #{gpt_forward.13} parent=1 // pred_fallthru
      _
    // Predicated region
    $region26: #{gpt_forward.13} parent=1 // pred_check
      _
    $region27: #{gpt_forward.13} parent=1 // pred_check_branch
      %64 = sbr.rel (0) target = $region29
    $region28: #{gpt_forward.13} parent=1 // pred_region
      %65 = dma.done [#allocation6], 16
    $region29: #{gpt_forward.13} parent=1 // pred_fallthru
      _
    // Predicated region
    $region30: #{gpt_forward.13} parent=1 // pred_check
      _
    $region31: #{gpt_forward.13} parent=1 // pred_check_branch
      %67 = sbr.rel (0) target = $region33
    $region32: #{gpt_forward.13} parent=1 // pred_region
      %68 = dma.done [#allocation9], 256
    $region33: #{gpt_forward.13} parent=1 // pred_fallthru
      _
    %v70 = vld [vmem:[#allocation2] sm:$0xff]
    %v71 = vld [vmem:[#allocation2 + $0x8] sm:$0xff]
    %v72 = vld [vmem:[#allocation5] sm:$0x1]
    %v73 = vld [vmem:[#allocation7] sm:$0x1]
    %vm74 = vcmask 261120
    %v75 = vsel %vm74, %v70, 0.0
    %76 = vadd.xlane.f32.xlu0 %v75
    %v77 = vpop.xlane.xlu0 %76
    %v78 = vsel %vm74, %v71, 0.0
    %79 = vadd.xlane.f32.xlu0 %v78
    %v80 = vpop.xlane.xlu0 %79
    %v81 = vrcp.pop 32.0
    %v82 = vmul.f32 %v77, %v81
    %v83 = vmul.f32 %v80, %v81
    %v84 = vsub.f32 %v70, %v82
    %v85 = vsub.f32 %v71, %v83
    %v86 = vmul.f32 %v84, %v84
    %v87 = vmul.f32 %v85, %v85
    %v88 = vsel %vm74, %v86, 0.0
    %89 = vadd.xlane.f32.xlu0 %v88
    %v90 = vpop.xlane.xlu0 %89
    %v91 = vsel %vm74, %v87, 0.0
    %92 = vadd.xlane.f32.xlu0 %v91
    %v93 = vpop.xlane.xlu0 %92
    %v94 = vmul.f32 %v90, %v81
    %v95 = vmul.f32 %v93, %v81
    %v96 = vadd.f32 %v94, 1e-05
    %v97 = vadd.f32 %v95, 1e-05
    %v98 = vrsqrt.pop %v96
    %v99 = vrsqrt.pop %v97
    %v100 = vmul.f32 %v84, %v98
    %v101 = vmul.f32 %v85, %v99
    %v103 = vlaneseq
    %v104 = vshrl.u32 %v103, 7
    %v105 = vsub.s32 0, %v104
    %v106 = vrot.slane %v72, %v105
    %v108 = vmul.f32 %v100, %v106
    %v109 = vmul.f32 %v101, %v106
    %v111 = vlaneseq
    %v112 = vshrl.u32 %v111, 7
    %v113 = vsub.s32 0, %v112
    %v114 = vrot.slane %v73, %v113
    %v116 = vadd.f32 %v108, %v114
    %v117 = vadd.f32 %v109, %v114
    %v118 = vpack.c.bf16 %v117, %v116
    %v119 = vld [vmem:[#allocation8] sm:$0xf]
    %v120 = vld [vmem:[#allocation8 + $0x4] sm:$0xf]
    %v121 = vld [vmem:[#allocation8 + $0x8] sm:$0xf]
    %v122 = vld [vmem:[#allocation8 + $0xc] sm:$0xf]
    %v127 = vunpack.c.l.b16 %v119
    %v128 = vunpack.c.l.b16 %v120
    %v129 = vunpack.c.l.b16 %v121
    %v130 = vunpack.c.l.b16 %v122
    %v131 = vpack.c.b16 %v128, %v127
    %v132 = vpack.c.b16 %v130, %v129
    %v136 = vsel %vm74, %v118, 0
    %138 = vmatprep.subr.bf16.mxu0 0
    %139 = vmatpush1.bf16.msra.mxu0 %v131
    %140 = vmatprep.subr.bf16.mxu0 0
    %141 = vmatpush1.bf16.msra.mxu0 %v132
    %142 = vmatprep.subr.bf16.mxu0 0
    %143 = vmatpush1.bf16.msra.mxu0 0
    %144 = vmatprep.subr.bf16.mxu0 0
    %145 = vmatpush1.bf16.msra.mxu0 0
    %146 = vmatprep.subr.bf16.mxu0 0
    %147 = vmatpush1.bf16.msra.mxu0 0
    %148 = vmatprep.subr.bf16.mxu0 0
    %149 = vmatpush1.bf16.msra.mxu0 0
    %150 = vmatprep.subr.bf16.mxu0 0
    %151 = vmatpush1.bf16.msra.mxu0 0
    %152 = vmatprep.subr.bf16.mxu0 0
    %153 = vmatpush1.bf16.msra.mxu0 0
    %154 = vmatprep.subr.bf16.mxu0 0
    %155 = vmatpush1.bf16.msra.mxu0 0
    %156 = vmatprep.subr.bf16.mxu0 0
    %157 = vmatpush1.bf16.msra.mxu0 0
    %158 = vmatprep.subr.bf16.mxu0 0
    %159 = vmatpush1.bf16.msra.mxu0 0
    %160 = vmatprep.subr.bf16.mxu0 0
    %161 = vmatpush1.bf16.msra.mxu0 0
    %162 = vmatprep.subr.bf16.mxu0 0
    %163 = vmatpush1.bf16.msra.mxu0 0
    %164 = vmatprep.subr.bf16.mxu0 0
    %165 = vmatpush1.bf16.msra.mxu0 0
    %166 = vmatprep.subr.bf16.mxu0 0
    %167 = vmatpush1.bf16.msra.mxu0 0
    %168 = vmatprep.subr.bf16.mxu0 0
    %169 = vmatpush1.bf16.msra.mxu0 0
    %170 = vmatprep.mubr.bf16.mxu0 0
    %171 = vmatmul.mubr.bf16.gmra.mrb[0].mxu0 %v136
    %v172 = vpop.f32.mrb[0].mxu0
    %v173 = vadd.f32 0.0, %v172
    %v174 = vpop.f32.mrb[0].mxu0
    %v175 = vpop.f32.mrb[0].mxu0
    %v176 = vadd.f32 0.0, %v175
    %v177 = vpop.f32.mrb[0].mxu0
    %178 = vdwg.mxu0
    %179 = vst [vmem:[#allocation10] sm:$0xff] %v173
    %180 = vst [vmem:[#allocation10 + $0x8] sm:$0xff] %v176
    // Predicated region
    $region34: #{gpt_forward.13} parent=1 // pred_check
      _
    $region35: #{gpt_forward.13} parent=1 // pred_check_branch
      %182 = sbr.rel (0) target = $region37
    $region36: #{gpt_forward.13} parent=1 // pred_region
      %s184 = ssub.s32 256, 256
      %185 = vsyncadd [#allocation4], %s184
      %s186 = sshll.u32 [#allocation10], 4
      %s187 = int_to_ptr.vmem [resolvable:$true] %s186
      %192 = dma.vmem_to_hbm [thread:$0]  %s187, 256, %s4, [#allocation4], 128, 128, 8
    $region37: #{gpt_forward.13} parent=1 // pred_fallthru
      _
    // Predicated region
    $region38: #{gpt_forward.13} parent=1 // pred_check
      _
    $region39: #{gpt_forward.13} parent=1 // pred_check_branch
      %194 = sbr.rel (0) target = $region41
    $region40: #{gpt_forward.13} parent=1 // pred_region
      %195 = dma.done [#allocation4], 256
    $region41: #{gpt_forward.13} parent=1 // pred_fallthru
      _
    %196 = vsyncpa [#allocation3], 1
    %197 = vsyncpa [#allocation6], 1
    %198 = vsyncpa [#allocation9], 1
    %199 = vsyncpa [#allocation4], 1

// kernel: gpt_forward.7
$region0: #{gpt_forward.7}
  #allocation0 [shape = 'u32[]', space=smem, size = 0x4, offset = 0x4, fixed_abs, tag = 'smem constant byte address 0x4 - core index']
  #allocation1 [shape = 'u32[144,128]{1,0:T(1,128)}', space=vmem, size = 0x12000, scoped, tag = 'internal scratch']
  %s0 = inlined_call_operand.hbm [shape: f32[16,32], index: 0, kind: input, shape index: {}]
  %s1 = inlined_call_operand.hbm [shape: f32[1,32], index: 1, kind: input, shape index: {}]
  %s2 = inlined_call_operand.hbm [shape: f32[1,32], index: 2, kind: input, shape index: {}]
  %s3 = inlined_call_operand.hbm [shape: bf16[32,96], index: 3, kind: input, shape index: {}]
  %s4 = inlined_call_operand.hbm [shape: f32[1,96], index: 4, kind: input, shape index: {}]
  %s5 = inlined_call_operand.hbm [shape: bf16[16,96], index: 5, kind: output, shape index: {}]
  %s6 = sld [smem:[#allocation0]]
  $region50: #{gpt_forward.7} parent=0
    _
  %s8 = ssub.s32 1, %s6
  %s9 = scalar_select 0, %s8, %s6
  $region1: #{gpt_forward.7} parent=0
    #allocation2 [shape = 'u8[8192]{0}', space=vmem, size = 0x2000, scoped, tag = 'input window, operand 0, single buffered']
    #allocation3 [shape = 's32[1]{0}', space=sflag, size = 0x4, scoped, tag = 'scoped memory for gpt_forward.7']
    #allocation4 [shape = 's32[1]{0}', space=sflag, size = 0x4, scoped, tag = 'scoped memory for gpt_forward.7']
    #allocation5 [shape = 'u8[512]{0}', space=vmem, size = 0x400, scoped, tag = 'input window, operand 1, single buffered']
    #allocation6 [shape = 's32[1]{0}', space=sflag, size = 0x4, scoped, tag = 'scoped memory for gpt_forward.7']
    #allocation7 [shape = 'u8[512]{0}', space=vmem, size = 0x400, scoped, tag = 'input window, operand 2, single buffered']
    #allocation8 [shape = 'u8[8192]{0}', space=vmem, size = 0x2000, scoped, tag = 'input window, operand 3, single buffered']
    #allocation9 [shape = 's32[1]{0}', space=sflag, size = 0x4, scoped, tag = 'scoped memory for gpt_forward.7']
    #allocation10 [shape = 'u8[512]{0}', space=vmem, size = 0x400, scoped, tag = 'input window, operand 4, single buffered']
    #allocation11 [shape = 'u8[4096]{0}', space=vmem, size = 0x1000, scoped, tag = 'output window, operand 0, single buffered']
    %10 = vsyncpa [#allocation3], 0
    %11 = vsyncpa [#allocation6], 0
    %12 = vsyncpa [#allocation9], 0
    %13 = vsyncpa [#allocation4], 0
    // Predicated region
    $region2: #{gpt_forward.7} parent=1 // pred_check
      _
    $region3: #{gpt_forward.7} parent=1 // pred_check_branch
      %15 = sbr.rel (0) target = $region5
    $region4: #{gpt_forward.7} parent=1 // pred_region
      %s17 = ssub.s32 256, 256
      %18 = vsyncadd [#allocation3], %s17
      %s19 = sshll.u32 [#allocation2], 4
      %s20 = int_to_ptr.vmem [resolvable:$true] %s19
      %25 = dma.hbm_to_vmem [thread:$0]  %s0, 256, %s20, [#allocation3], 128, 128, 8
    $region5: #{gpt_forward.7} parent=1 // pred_fallthru
      _
    // Predicated region
    $region6: #{gpt_forward.7} parent=1 // pred_check
      _
    $region7: #{gpt_forward.7} parent=1 // pred_check_branch
      %27 = sbr.rel (0) target = $region9
    $region8: #{gpt_forward.7} parent=1 // pred_region
      %s29 = ssub.s32 16, 16
      %30 = vsyncadd [#allocation6], %s29
      %s32 = sshll.u32 [#allocation5], 4
      %s33 = int_to_ptr.vmem [resolvable:$true] %s32
      %35 = dma.hbm_to_vmem [thread:$0]  %s1, 16, %s33, [#allocation6]
    $region9: #{gpt_forward.7} parent=1 // pred_fallthru
      _
    // Predicated region
    $region10: #{gpt_forward.7} parent=1 // pred_check
      _
    $region11: #{gpt_forward.7} parent=1 // pred_check_branch
      %37 = sbr.rel (0) target = $region13
    $region12: #{gpt_forward.7} parent=1 // pred_region
      %s39 = ssub.s32 16, 16
      %40 = vsyncadd [#allocation6], %s39
      %s42 = sshll.u32 [#allocation7], 4
      %s43 = int_to_ptr.vmem [resolvable:$true] %s42
      %45 = dma.hbm_to_vmem [thread:$0]  %s2, 16, %s43, [#allocation6]
    $region13: #{gpt_forward.7} parent=1 // pred_fallthru
      _
    // Predicated region
    $region14: #{gpt_forward.7} parent=1 // pred_check
      _
    $region15: #{gpt_forward.7} parent=1 // pred_check_branch
      %47 = sbr.rel (0) target = $region17
    $region16: #{gpt_forward.7} parent=1 // pred_region
      %s49 = ssub.s32 256, 256
      %50 = vsyncadd [#allocation9], %s49
      %s51 = sshll.u32 [#allocation8], 4
      %s52 = int_to_ptr.vmem [resolvable:$true] %s51
      %57 = dma.hbm_to_vmem [thread:$0]  %s3, 256, %s52, [#allocation9], 64, 64, 4
    $region17: #{gpt_forward.7} parent=1 // pred_fallthru
      _
    // Predicated region
    $region18: #{gpt_forward.7} parent=1 // pred_check
      _
    $region19: #{gpt_forward.7} parent=1 // pred_check_branch
      %59 = sbr.rel (0) target = $region21
    $region20: #{gpt_forward.7} parent=1 // pred_region
      %s61 = ssub.s32 16, 16
      %62 = vsyncadd [#allocation9], %s61
      %s64 = sshll.u32 [#allocation10], 4
      %s65 = int_to_ptr.vmem [resolvable:$true] %s64
      %67 = dma.hbm_to_vmem [thread:$0]  %s4, 16, %s65, [#allocation9]
    $region21: #{gpt_forward.7} parent=1 // pred_fallthru
      _
    // Predicated region
    $region22: #{gpt_forward.7} parent=1 // pred_check
      _
    $region23: #{gpt_forward.7} parent=1 // pred_check_branch
      %69 = sbr.rel (0) target = $region25
    $region24: #{gpt_forward.7} parent=1 // pred_region
      %70 = dma.done [#allocation3], 256
    $region25: #{gpt_forward.7} parent=1 // pred_fallthru
      _
    // Predicated region
    $region26: #{gpt_forward.7} parent=1 // pred_check
      _
    $region27: #{gpt_forward.7} parent=1 // pred_check_branch
      %72 = sbr.rel (0) target = $region29
    $region28: #{gpt_forward.7} parent=1 // pred_region
      %73 = dma.done [#allocation6], 16
    $region29: #{gpt_forward.7} parent=1 // pred_fallthru
      _
    // Predicated region
    $region30: #{gpt_forward.7} parent=1 // pred_check
      _
    $region31: #{gpt_forward.7} parent=1 // pred_check_branch
      %75 = sbr.rel (0) target = $region33
    $region32: #{gpt_forward.7} parent=1 // pred_region
      %76 = dma.done [#allocation6], 16
    $region33: #{gpt_forward.7} parent=1 // pred_fallthru
      _
    // Predicated region
    $region34: #{gpt_forward.7} parent=1 // pred_check
      _
    $region35: #{gpt_forward.7} parent=1 // pred_check_branch
      %78 = sbr.rel (0) target = $region37
    $region36: #{gpt_forward.7} parent=1 // pred_region
      %79 = dma.done [#allocation9], 256
    $region37: #{gpt_forward.7} parent=1 // pred_fallthru
      _
    // Predicated region
    $region38: #{gpt_forward.7} parent=1 // pred_check
      _
    $region39: #{gpt_forward.7} parent=1 // pred_check_branch
      %81 = sbr.rel (0) target = $region41
    $region40: #{gpt_forward.7} parent=1 // pred_region
      %82 = dma.done [#allocation9], 16
    $region41: #{gpt_forward.7} parent=1 // pred_fallthru
      _
    %v84 = vld [vmem:[#allocation2] sm:$0xff]
    %v85 = vld [vmem:[#allocation2 + $0x8] sm:$0xff]
    %v86 = vld [vmem:[#allocation5] sm:$0x1]
    %v87 = vld [vmem:[#allocation7] sm:$0x1]
    %vm88 = vcmask 261120
    %v89 = vsel %vm88, %v84, 0.0
    %90 = vadd.xlane.f32.xlu0 %v89
    %v91 = vpop.xlane.xlu0 %90
    %v92 = vsel %vm88, %v85, 0.0
    %93 = vadd.xlane.f32.xlu0 %v92
    %v94 = vpop.xlane.xlu0 %93
    %v95 = vrcp.pop 32.0
    %v96 = vmul.f32 %v91, %v95
    %v97 = vmul.f32 %v94, %v95
    %v98 = vsub.f32 %v84, %v96
    %v99 = vsub.f32 %v85, %v97
    %v100 = vmul.f32 %v98, %v98
    %v101 = vmul.f32 %v99, %v99
    %v102 = vsel %vm88, %v100, 0.0
    %103 = vadd.xlane.f32.xlu0 %v102
    %v104 = vpop.xlane.xlu0 %103
    %v105 = vsel %vm88, %v101, 0.0
    %106 = vadd.xlane.f32.xlu0 %v105
    %v107 = vpop.xlane.xlu0 %106
    %v108 = vmul.f32 %v104, %v95
    %v109 = vmul.f32 %v107, %v95
    %v110 = vadd.f32 %v108, 1e-05
    %v111 = vadd.f32 %v109, 1e-05
    %v112 = vrsqrt.pop %v110
    %v113 = vrsqrt.pop %v111
    %v114 = vmul.f32 %v98, %v112
    %v115 = vmul.f32 %v99, %v113
    %v117 = vlaneseq
    %v118 = vshrl.u32 %v117, 7
    %v119 = vsub.s32 0, %v118
    %v120 = vrot.slane %v86, %v119
    %v122 = vmul.f32 %v114, %v120
    %v123 = vmul.f32 %v115, %v120
    %v125 = vlaneseq
    %v126 = vshrl.u32 %v125, 7
    %v127 = vsub.s32 0, %v126
    %v128 = vrot.slane %v87, %v127
    %v130 = vadd.f32 %v122, %v128
    %v131 = vadd.f32 %v123, %v128
    %v132 = vpack.c.bf16 %v131, %v130
    %v133 = vld [vmem:[#allocation8] sm:$0xf]
    %v134 = vld [vmem:[#allocation8 + $0x4] sm:$0xf]
    %v135 = vld [vmem:[#allocation8 + $0x8] sm:$0xf]
    %v136 = vld [vmem:[#allocation8 + $0xc] sm:$0xf]
    %v137 = vld [vmem:[#allocation10] sm:$0x1]
    %v139 = vlaneseq
    %v140 = vshrl.u32 %v139, 7
    %v141 = vsub.s32 0, %v140
    %v142 = vrot.slane %v137, %v141
    %v148 = vunpack.c.l.b16 %v133
    %v149 = vunpack.c.l.b16 %v134
    %v150 = vunpack.c.l.b16 %v135
    %v151 = vunpack.c.l.b16 %v136
    %v152 = vpack.c.b16 %v149, %v148
    %v153 = vpack.c.b16 %v151, %v150
    %v157 = vsel %vm88, %v132, 0
    %159 = vmatprep.subr.bf16.mxu0 0
    %160 = vmatpush1.bf16.msra.mxu0 %v152
    %161 = vmatprep.subr.bf16.mxu0 0
    %162 = vmatpush1.bf16.msra.mxu0 %v153
    %163 = vmatprep.subr.bf16.mxu0 0
    %164 = vmatpush1.bf16.msra.mxu0 0
    %165 = vmatprep.subr.bf16.mxu0 0
    %166 = vmatpush1.bf16.msra.mxu0 0
    %167 = vmatprep.subr.bf16.mxu0 0
    %168 = vmatpush1.bf16.msra.mxu0 0
    %169 = vmatprep.subr.bf16.mxu0 0
    %170 = vmatpush1.bf16.msra.mxu0 0
    %171 = vmatprep.subr.bf16.mxu0 0
    %172 = vmatpush1.bf16.msra.mxu0 0
    %173 = vmatprep.subr.bf16.mxu0 0
    %174 = vmatpush1.bf16.msra.mxu0 0
    %175 = vmatprep.subr.bf16.mxu0 0
    %176 = vmatpush1.bf16.msra.mxu0 0
    %177 = vmatprep.subr.bf16.mxu0 0
    %178 = vmatpush1.bf16.msra.mxu0 0
    %179 = vmatprep.subr.bf16.mxu0 0
    %180 = vmatpush1.bf16.msra.mxu0 0
    %181 = vmatprep.subr.bf16.mxu0 0
    %182 = vmatpush1.bf16.msra.mxu0 0
    %183 = vmatprep.subr.bf16.mxu0 0
    %184 = vmatpush1.bf16.msra.mxu0 0
    %185 = vmatprep.subr.bf16.mxu0 0
    %186 = vmatpush1.bf16.msra.mxu0 0
    %187 = vmatprep.subr.bf16.mxu0 0
    %188 = vmatpush1.bf16.msra.mxu0 0
    %189 = vmatprep.subr.bf16.mxu0 0
    %190 = vmatpush1.bf16.msra.mxu0 0
    %191 = vmatprep.mubr.bf16.mxu0 0
    %192 = vmatmul.mubr.bf16.gmra.mrb[0].mxu0 %v157
    %v193 = vpop.f32.mrb[0].mxu0
    %v194 = vadd.f32 %v142, %v193
    %v195 = vpop.f32.mrb[0].mxu0
    %v196 = vpop.f32.mrb[0].mxu0
    %v197 = vadd.f32 %v142, %v196
    %v198 = vpop.f32.mrb[0].mxu0
    %199 = vdwg.mxu0
    %v200 = vpack.c.bf16 %v197, %v194
    %v202 = vunpack.c.l.b16 %v200
    %v203 = vunpack.c.h.b16 %v200
    %v204 = vpack.c.b16 %v202, %v202
    %v205 = vpack.c.b16 %v203, %v203
    %vm208 = vcmask 781312
    %209 = vst.msk [vmem:[#allocation11] sm:$0xf] %vm208, %v204
    %210 = vst.msk [vmem:[#allocation11 + $0x4] sm:$0xf] %vm208, %v205
    // Predicated region
    $region42: #{gpt_forward.7} parent=1 // pred_check
      _
    $region43: #{gpt_forward.7} parent=1 // pred_check_branch
      %212 = sbr.rel (0) target = $region45
    $region44: #{gpt_forward.7} parent=1 // pred_region
      %s214 = ssub.s32 128, 128
      %215 = vsyncadd [#allocation4], %s214
      %s216 = sshll.u32 [#allocation11], 4
      %s217 = int_to_ptr.vmem [resolvable:$true] %s216
      %222 = dma.vmem_to_hbm [thread:$0]  %s217, 128, %s5, [#allocation4], 64, 64, 4
    $region45: #{gpt_forward.7} parent=1 // pred_fallthru
      _
    // Predicated region
    $region46: #{gpt_forward.7} parent=1 // pred_check
      _
    $region47: #{gpt_forward.7} parent=1 // pred_check_branch
      %224 = sbr.rel (0) target = $region49
    $region48: #{gpt_forward.7} parent=1 // pred_region
      %225 = dma.done [#allocation4], 128
    $region49: #{gpt_forward.7} parent=1 // pred_fallthru
      _
    %226 = vsyncpa [#allocation3], 1
    %227 = vsyncpa [#allocation6], 1
    %228 = vsyncpa [#allocation9], 1
    %229 = vsyncpa [#allocation4], 1

// kernel: gpt_forward.9
$region0: #{gpt_forward.9}
  #allocation0 [shape = 'u32[]', space=smem, size = 0x4, offset = 0x4, fixed_abs, tag = 'smem constant byte address 0x4 - core index']
  #allocation1 [shape = 'u32[144,128]{1,0:T(1,128)}', space=vmem, size = 0x12000, scoped, tag = 'internal scratch']
  %s0 = inlined_call_operand.hbm [shape: f32[16,32], index: 0, kind: input, shape index: {}]
  %s1 = inlined_call_operand.hbm [shape: f32[1,32], index: 1, kind: input, shape index: {}]
  %s2 = inlined_call_operand.hbm [shape: f32[1,32], index: 2, kind: input, shape index: {}]
  %s3 = inlined_call_operand.hbm [shape: bf16[32,128], index: 3, kind: input, shape index: {}]
  %s4 = inlined_call_operand.hbm [shape: f32[1,128], index: 4, kind: input, shape index: {}]
  %s5 = inlined_call_operand.hbm [shape: bf16[128,32], index: 5, kind: input, shape index: {}]
  %s6 = inlined_call_operand.hbm [shape: f32[1,32], index: 6, kind: input, shape index: {}]
  %s7 = inlined_call_operand.hbm [shape: f32[16,32], index: 7, kind: output, shape index: {}]
  %s8 = sld [smem:[#allocation0]]
  $region66: #{gpt_forward.9} parent=0
    _
  %s10 = ssub.s32 1, %s8
  %s11 = scalar_select 0, %s10, %s8
  $region1: #{gpt_forward.9} parent=0
    #allocation2 [shape = 'u8[8192]{0}', space=vmem, size = 0x2000, scoped, tag = 'input window, operand 0, single buffered']
    #allocation3 [shape = 's32[1]{0}', space=sflag, size = 0x4, scoped, tag = 'scoped memory for gpt_forward.9']
    #allocation4 [shape = 's32[1]{0}', space=sflag, size = 0x4, scoped, tag = 'scoped memory for gpt_forward.9']
    #allocation5 [shape = 'u8[512]{0}', space=vmem, size = 0x400, scoped, tag = 'input window, operand 1, single buffered']
    #allocation6 [shape = 's32[1]{0}', space=sflag, size = 0x4, scoped, tag = 'scoped memory for gpt_forward.9']
    #allocation7 [shape = 'u8[512]{0}', space=vmem, size = 0x400, scoped, tag = 'input window, operand 2, single buffered']
    #allocation8 [shape = 'u8[8192]{0}', space=vmem, size = 0x2000, scoped, tag = 'input window, operand 3, single buffered']
    #allocation9 [shape = 's32[1]{0}', space=sflag, size = 0x4, scoped, tag = 'scoped memory for gpt_forward.9']
    #allocation10 [shape = 'u8[512]{0}', space=vmem, size = 0x400, scoped, tag = 'input window, operand 4, single buffered']
    #allocation11 [shape = 'u8[32768]{0}', space=vmem, size = 0x8000, scoped, tag = 'input window, operand 5, single buffered']
    #allocation12 [shape = 's32[1]{0}', space=sflag, size = 0x4, scoped, tag = 'scoped memory for gpt_forward.9']
    #allocation13 [shape = 'u8[512]{0}', space=vmem, size = 0x400, scoped, tag = 'input window, operand 6, single buffered']
    #allocation14 [shape = 'u8[8192]{0}', space=vmem, size = 0x2000, scoped, tag = 'output window, operand 0, single buffered']
    %12 = vsyncpa [#allocation3], 0
    %13 = vsyncpa [#allocation6], 0
    %14 = vsyncpa [#allocation9], 0
    %15 = vsyncpa [#allocation12], 0
    %16 = vsyncpa [#allocation4], 0
    // Predicated region
    $region2: #{gpt_forward.9} parent=1 // pred_check
      _
    $region3: #{gpt_forward.9} parent=1 // pred_check_branch
      %18 = sbr.rel (0) target = $region5
    $region4: #{gpt_forward.9} parent=1 // pred_region
      %s20 = ssub.s32 256, 256
      %21 = vsyncadd [#allocation3], %s20
      %s22 = sshll.u32 [#allocation2], 4
      %s23 = int_to_ptr.vmem [resolvable:$true] %s22
      %28 = dma.hbm_to_vmem [thread:$0]  %s0, 256, %s23, [#allocation3], 128, 128, 8
    $region5: #{gpt_forward.9} parent=1 // pred_fallthru
      _
    // Predicated region
    $region6: #{gpt_forward.9} parent=1 // pred_check
      _
    $region7: #{gpt_forward.9} parent=1 // pred_check_branch
      %30 = sbr.rel (0) target = $region9
    $region8: #{gpt_forward.9} parent=1 // pred_region
      %s32 = ssub.s32 16, 16
      %33 = vsyncadd [#allocation6], %s32
      %s35 = sshll.u32 [#allocation5], 4
      %s36 = int_to_ptr.vmem [resolvable:$true] %s35
      %38 = dma.hbm_to_vmem [thread:$0]  %s1, 16, %s36, [#allocation6]
    $region9: #{gpt_forward.9} parent=1 // pred_fallthru
      _
    // Predicated region
    $region10: #{gpt_forward.9} parent=1 // pred_check
      _
    $region11: #{gpt_forward.9} parent=1 // pred_check_branch
      %40 = sbr.rel (0) target = $region13
    $region12: #{gpt_forward.9} parent=1 // pred_region
      %s42 = ssub.s32 16, 16
      %43 = vsyncadd [#allocation6], %s42
      %s45 = sshll.u32 [#allocation7], 4
      %s46 = int_to_ptr.vmem [resolvable:$true] %s45
      %48 = dma.hbm_to_vmem [thread:$0]  %s2, 16, %s46, [#allocation6]
    $region13: #{gpt_forward.9} parent=1 // pred_fallthru
      _
    // Predicated region
    $region14: #{gpt_forward.9} parent=1 // pred_check
      _
    $region15: #{gpt_forward.9} parent=1 // pred_check_branch
      %50 = sbr.rel (0) target = $region17
    $region16: #{gpt_forward.9} parent=1 // pred_region
      %s52 = ssub.s32 256, 256
      %53 = vsyncadd [#allocation9], %s52
      %s54 = sshll.u32 [#allocation8], 4
      %s55 = int_to_ptr.vmem [resolvable:$true] %s54
      %60 = dma.hbm_to_vmem [thread:$0]  %s3, 256, %s55, [#allocation9], 64, 64, 4
    $region17: #{gpt_forward.9} parent=1 // pred_fallthru
      _
    // Predicated region
    $region18: #{gpt_forward.9} parent=1 // pred_check
      _
    $region19: #{gpt_forward.9} parent=1 // pred_check_branch
      %62 = sbr.rel (0) target = $region21
    $region20: #{gpt_forward.9} parent=1 // pred_region
      %s64 = ssub.s32 16, 16
      %65 = vsyncadd [#allocation9], %s64
      %s67 = sshll.u32 [#allocation10], 4
      %s68 = int_to_ptr.vmem [resolvable:$true] %s67
      %70 = dma.hbm_to_vmem [thread:$0]  %s4, 16, %s68, [#allocation9]
    $region21: #{gpt_forward.9} parent=1 // pred_fallthru
      _
    // Predicated region
    $region22: #{gpt_forward.9} parent=1 // pred_check
      _
    $region23: #{gpt_forward.9} parent=1 // pred_check_branch
      %72 = sbr.rel (0) target = $region25
    $region24: #{gpt_forward.9} parent=1 // pred_region
      %s74 = ssub.s32 1024, 1024
      %75 = vsyncadd [#allocation12], %s74
      %s76 = sshll.u32 [#allocation11], 4
      %s77 = int_to_ptr.vmem [resolvable:$true] %s76
      %82 = dma.hbm_to_vmem [thread:$0]  %s5, 1024, %s77, [#allocation12], 64, 64, 4
    $region25: #{gpt_forward.9} parent=1 // pred_fallthru
      _
    // Predicated region
    $region26: #{gpt_forward.9} parent=1 // pred_check
      _
    $region27: #{gpt_forward.9} parent=1 // pred_check_branch
      %84 = sbr.rel (0) target = $region29
    $region28: #{gpt_forward.9} parent=1 // pred_region
      %s86 = ssub.s32 16, 16
      %87 = vsyncadd [#allocation12], %s86
      %s89 = sshll.u32 [#allocation13], 4
      %s90 = int_to_ptr.vmem [resolvable:$true] %s89
      %92 = dma.hbm_to_vmem [thread:$0]  %s6, 16, %s90, [#allocation12]
    $region29: #{gpt_forward.9} parent=1 // pred_fallthru
      _
    // Predicated region
    $region30: #{gpt_forward.9} parent=1 // pred_check
      _
    $region31: #{gpt_forward.9} parent=1 // pred_check_branch
      %94 = sbr.rel (0) target = $region33
    $region32: #{gpt_forward.9} parent=1 // pred_region
      %95 = dma.done [#allocation3], 256
    $region33: #{gpt_forward.9} parent=1 // pred_fallthru
      _
    // Predicated region
    $region34: #{gpt_forward.9} parent=1 // pred_check
      _
    $region35: #{gpt_forward.9} parent=1 // pred_check_branch
      %97 = sbr.rel (0) target = $region37
    $region36: #{gpt_forward.9} parent=1 // pred_region
      %98 = dma.done [#allocation6], 16
    $region37: #{gpt_forward.9} parent=1 // pred_fallthru
      _
    // Predicated region
    $region38: #{gpt_forward.9} parent=1 // pred_check
      _
    $region39: #{gpt_forward.9} parent=1 // pred_check_branch
      %100 = sbr.rel (0) target = $region41
    $region40: #{gpt_forward.9} parent=1 // pred_region
      %101 = dma.done [#allocation6], 16
    $region41: #{gpt_forward.9} parent=1 // pred_fallthru
      _
    // Predicated region
    $region42: #{gpt_forward.9} parent=1 // pred_check
      _
    $region43: #{gpt_forward.9} parent=1 // pred_check_branch
      %103 = sbr.rel (0) target = $region45
    $region44: #{gpt_forward.9} parent=1 // pred_region
      %104 = dma.done [#allocation9], 256
    $region45: #{gpt_forward.9} parent=1 // pred_fallthru
      _
    // Predicated region
    $region46: #{gpt_forward.9} parent=1 // pred_check
      _
    $region47: #{gpt_forward.9} parent=1 // pred_check_branch
      %106 = sbr.rel (0) target = $region49
    $region48: #{gpt_forward.9} parent=1 // pred_region
      %107 = dma.done [#allocation9], 16
    $region49: #{gpt_forward.9} parent=1 // pred_fallthru
      _
    // Predicated region
    $region50: #{gpt_forward.9} parent=1 // pred_check
      _
    $region51: #{gpt_forward.9} parent=1 // pred_check_branch
      %109 = sbr.rel (0) target = $region53
    $region52: #{gpt_forward.9} parent=1 // pred_region
      %110 = dma.done [#allocation12], 1024
    $region53: #{gpt_forward.9} parent=1 // pred_fallthru
      _
    // Predicated region
    $region54: #{gpt_forward.9} parent=1 // pred_check
      _
    $region55: #{gpt_forward.9} parent=1 // pred_check_branch
      %112 = sbr.rel (0) target = $region57
    $region56: #{gpt_forward.9} parent=1 // pred_region
      %113 = dma.done [#allocation12], 16
    $region57: #{gpt_forward.9} parent=1 // pred_fallthru
      _
    %v115 = vld [vmem:[#allocation2] sm:$0xff]
    %v116 = vld [vmem:[#allocation2 + $0x8] sm:$0xff]
    %v117 = vld [vmem:[#allocation5] sm:$0x1]
    %v118 = vld [vmem:[#allocation7] sm:$0x1]
    %vm119 = vcmask 261120
    %v120 = vsel %vm119, %v115, 0.0
    %121 = vadd.xlane.f32.xlu0 %v120
    %v122 = vpop.xlane.xlu0 %121
    %v123 = vsel %vm119, %v116, 0.0
    %124 = vadd.xlane.f32.xlu0 %v123
    %v125 = vpop.xlane.xlu0 %124
    %v126 = vrcp.pop 32.0
    %v127 = vmul.f32 %v122, %v126
    %v128 = vmul.f32 %v125, %v126
    %v129 = vsub.f32 %v115, %v127
    %v130 = vsub.f32 %v116, %v128
    %v131 = vmul.f32 %v129, %v129
    %v132 = vmul.f32 %v130, %v130
    %v133 = vsel %vm119, %v131, 0.0
    %134 = vadd.xlane.f32.xlu0 %v133
    %v135 = vpop.xlane.xlu0 %134
    %v136 = vsel %vm119, %v132, 0.0
    %137 = vadd.xlane.f32.xlu0 %v136
    %v138 = vpop.xlane.xlu0 %137
    %v139 = vmul.f32 %v135, %v126
    %v140 = vmul.f32 %v138, %v126
    %v141 = vadd.f32 %v139, 1e-05
    %v142 = vadd.f32 %v140, 1e-05
    %v143 = vrsqrt.pop %v141
    %v144 = vrsqrt.pop %v142
    %v145 = vmul.f32 %v129, %v143
    %v146 = vmul.f32 %v130, %v144
    %v148 = vlaneseq
    %v149 = vshrl.u32 %v148, 7
    %v150 = vsub.s32 0, %v149
    %v151 = vrot.slane %v117, %v150
    %v153 = vmul.f32 %v145, %v151
    %v154 = vmul.f32 %v146, %v151
    %v156 = vlaneseq
    %v157 = vshrl.u32 %v156, 7
    %v158 = vsub.s32 0, %v157
    %v159 = vrot.slane %v118, %v158
    %v161 = vadd.f32 %v153, %v159
    %v162 = vadd.f32 %v154, %v159
    %v163 = vpack.c.bf16 %v162, %v161
    %v164 = vld [vmem:[#allocation8] sm:$0xf]
    %v165 = vld [vmem:[#allocation8 + $0x4] sm:$0xf]
    %v166 = vld [vmem:[#allocation8 + $0x8] sm:$0xf]
    %v167 = vld [vmem:[#allocation8 + $0xc] sm:$0xf]
    %v168 = vld [vmem:[#allocation10] sm:$0x1]
    %v170 = vlaneseq
    %v171 = vshrl.u32 %v170, 7
    %v172 = vsub.s32 0, %v171
    %v173 = vrot.slane %v168, %v172
    %v179 = vunpack.c.l.b16 %v164
    %v180 = vunpack.c.l.b16 %v165
    %v181 = vunpack.c.l.b16 %v166
    %v182 = vunpack.c.l.b16 %v167
    %v183 = vpack.c.b16 %v180, %v179
    %v184 = vpack.c.b16 %v182, %v181
    %v188 = vsel %vm119, %v163, 0
    %190 = vmatprep.subr.bf16.mxu0 0
    %191 = vmatpush1.bf16.msra.mxu0 %v183
    %192 = vmatprep.subr.bf16.mxu0 0
    %193 = vmatpush1.bf16.msra.mxu0 %v184
    %194 = vmatprep.subr.bf16.mxu0 0
    %195 = vmatpush1.bf16.msra.mxu0 0
    %196 = vmatprep.subr.bf16.mxu0 0
    %197 = vmatpush1.bf16.msra.mxu0 0
    %198 = vmatprep.subr.bf16.mxu0 0
    %199 = vmatpush1.bf16.msra.mxu0 0
    %200 = vmatprep.subr.bf16.mxu0 0
    %201 = vmatpush1.bf16.msra.mxu0 0
    %202 = vmatprep.subr.bf16.mxu0 0
    %203 = vmatpush1.bf16.msra.mxu0 0
    %204 = vmatprep.subr.bf16.mxu0 0
    %205 = vmatpush1.bf16.msra.mxu0 0
    %206 = vmatprep.subr.bf16.mxu0 0
    %207 = vmatpush1.bf16.msra.mxu0 0
    %208 = vmatprep.subr.bf16.mxu0 0
    %209 = vmatpush1.bf16.msra.mxu0 0
    %210 = vmatprep.subr.bf16.mxu0 0
    %211 = vmatpush1.bf16.msra.mxu0 0
    %212 = vmatprep.subr.bf16.mxu0 0
    %213 = vmatpush1.bf16.msra.mxu0 0
    %214 = vmatprep.subr.bf16.mxu0 0
    %215 = vmatpush1.bf16.msra.mxu0 0
    %216 = vmatprep.subr.bf16.mxu0 0
    %217 = vmatpush1.bf16.msra.mxu0 0
    %218 = vmatprep.subr.bf16.mxu0 0
    %219 = vmatpush1.bf16.msra.mxu0 0
    %220 = vmatprep.subr.bf16.mxu0 0
    %221 = vmatpush1.bf16.msra.mxu0 0
    %222 = vmatprep.mubr.bf16.mxu0 0
    %223 = vmatmul.mubr.bf16.gmra.mrb[0].mxu0 %v188
    %v224 = vpop.f32.mrb[0].mxu0
    %v225 = vadd.f32 %v173, %v224
    %v226 = vpop.f32.mrb[0].mxu0
    %v227 = vpop.f32.mrb[0].mxu0
    %v228 = vadd.f32 %v173, %v227
    %v229 = vpop.f32.mrb[0].mxu0
    %230 = vdwg.mxu0
    %v231 = vmul.f32 %v225, 0.5
    %v232 = vmul.f32 %v228, 0.5
    %v233 = vmul.f32 %v225, 0.70710677
    %v234 = vmul.f32 %v228, 0.70710677
    %v235 = verf.f32.pop %v233
    %v236 = verf.f32.pop %v234
    %v237 = vadd.f32 %v235, 1.0
    %v238 = vadd.f32 %v236, 1.0
    %v239 = vmul.f32 %v231, %v237
    %v240 = vmul.f32 %v232, %v238
    %v241 = vpack.c.bf16 %v240, %v239
    %v242 = vld [vmem:[#allocation11] sm:$0xf]
    %v243 = vld [vmem:[#allocation11 + $0x4] sm:$0xf]
    %v244 = vld [vmem:[#allocation11 + $0x8] sm:$0xf]
    %v245 = vld [vmem:[#allocation11 + $0xc] sm:$0xf]
    %v246 = vld [vmem:[#allocation11 + $0x10] sm:$0xf]
    %v247 = vld [vmem:[#allocation11 + $0x14] sm:$0xf]
    %v248 = vld [vmem:[#allocation11 + $0x18] sm:$0xf]
    %v249 = vld [vmem:[#allocation11 + $0x1c] sm:$0xf]
    %v250 = vld [vmem:[#allocation11 + $0x20] sm:$0xf]
    %v251 = vld [vmem:[#allocation11 + $0x24] sm:$0xf]
    %v252 = vld [vmem:[#allocation11 + $0x28] sm:$0xf]
    %v253 = vld [vmem:[#allocation11 + $0x2c] sm:$0xf]
    %v254 = vld [vmem:[#allocation11 + $0x30] sm:$0xf]
    %v255 = vld [vmem:[#allocation11 + $0x34] sm:$0xf]
    %v256 = vld [vmem:[#allocation11 + $0x38] sm:$0xf]
    %v257 = vld [vmem:[#allocation11 + $0x3c] sm:$0xf]
    %v274 = vunpack.c.l.b16 %v242
    %v275 = vunpack.c.l.b16 %v243
    %v276 = vunpack.c.l.b16 %v244
    %v277 = vunpack.c.l.b16 %v245
    %v278 = vunpack.c.l.b16 %v246
    %v279 = vunpack.c.l.b16 %v247
    %v280 = vunpack.c.l.b16 %v248
    %v281 = vunpack.c.l.b16 %v249
    %v282 = vunpack.c.l.b16 %v250
    %v283 = vunpack.c.l.b16 %v251
    %v284 = vunpack.c.l.b16 %v252
    %v285 = vunpack.c.l.b16 %v253
    %v286 = vunpack.c.l.b16 %v254
    %v287 = vunpack.c.l.b16 %v255
    %v288 = vunpack.c.l.b16 %v256
    %v289 = vunpack.c.l.b16 %v257
    %v290 = vpack.c.b16 %v275, %v274
    %v291 = vpack.c.b16 %v277, %v276
    %v292 = vpack.c.b16 %v279, %v278
    %v293 = vpack.c.b16 %v281, %v280
    %v294 = vpack.c.b16 %v283, %v282
    %v295 = vpack.c.b16 %v285, %v284
    %v296 = vpack.c.b16 %v287, %v286
    %v297 = vpack.c.b16 %v289, %v288
    %306 = vmatprep.subr.bf16.mxu0 0
    %307 = vmatpush1.bf16.msra.mxu0 %v290
    %308 = vmatprep.subr.bf16.mxu0 0
    %309 = vmatpush1.bf16.msra.mxu0 %v291
    %310 = vmatprep.subr.bf16.mxu0 0
    %311 = vmatpush1.bf16.msra.mxu0 %v292
    %312 = vmatprep.subr.bf16.mxu0 0
    %313 = vmatpush1.bf16.msra.mxu0 %v293
    %314 = vmatprep.subr.bf16.mxu0 0
    %315 = vmatpush1.bf16.msra.mxu0 %v294
    %316 = vmatprep.subr.bf16.mxu0 0
    %317 = vmatpush1.bf16.msra.mxu0 %v295
    %318 = vmatprep.subr.bf16.mxu0 0
    %319 = vmatpush1.bf16.msra.mxu0 %v296
    %320 = vmatprep.subr.bf16.mxu0 0
    %321 = vmatpush1.bf16.msra.mxu0 %v297
    %322 = vmatprep.subr.bf16.mxu0 0
    %323 = vmatpush1.bf16.msra.mxu0 0
    %324 = vmatprep.subr.bf16.mxu0 0
    %325 = vmatpush1.bf16.msra.mxu0 0
    %326 = vmatprep.subr.bf16.mxu0 0
    %327 = vmatpush1.bf16.msra.mxu0 0
    %328 = vmatprep.subr.bf16.mxu0 0
    %329 = vmatpush1.bf16.msra.mxu0 0
    %330 = vmatprep.subr.bf16.mxu0 0
    %331 = vmatpush1.bf16.msra.mxu0 0
    %332 = vmatprep.subr.bf16.mxu0 0
    %333 = vmatpush1.bf16.msra.mxu0 0
    %334 = vmatprep.subr.bf16.mxu0 0
    %335 = vmatpush1.bf16.msra.mxu0 0
    %336 = vmatprep.subr.bf16.mxu0 0
    %337 = vmatpush1.bf16.msra.mxu0 0
    %338 = vmatprep.mubr.bf16.mxu0 0
    %339 = vmatmul.mubr.bf16.gmra.mrb[0].mxu0 %v241
    %v340 = vpop.f32.mrb[0].mxu0
    %v341 = vadd.f32 0.0, %v340
    %v342 = vpop.f32.mrb[0].mxu0
    %v343 = vpop.f32.mrb[0].mxu0
    %v344 = vadd.f32 0.0, %v343
    %v345 = vpop.f32.mrb[0].mxu0
    %346 = vdwg.mxu0
    %v347 = vadd.f32 %v115, %v341
    %v348 = vadd.f32 %v116, %v344
    %v349 = vld [vmem:[#allocation13] sm:$0x1]
    %v351 = vlaneseq
    %v352 = vshrl.u32 %v351, 7
    %v353 = vsub.s32 0, %v352
    %v354 = vrot.slane %v349, %v353
    %v356 = vadd.f32 %v347, %v354
    %v357 = vadd.f32 %v348, %v354
    %358 = vst.msk [vmem:[#allocation14] sm:$0xff] %vm119, %v356
    %359 = vst.msk [vmem:[#allocation14 + $0x8] sm:$0xff] %vm119, %v357
    // Predicated region
    $region58: #{gpt_forward.9} parent=1 // pred_check
      _
    $region59: #{gpt_forward.9} parent=1 // pred_check_branch
      %361 = sbr.rel (0) target = $region61
    $region60: #{gpt_forward.9} parent=1 // pred_region
      %s363 = ssub.s32 256, 256
      %364 = vsyncadd [#allocation4], %s363
      %s365 = sshll.u32 [#allocation14], 4
      %s366 = int_to_ptr.vmem [resolvable:$true] %s365
      %371 = dma.vmem_to_hbm [thread:$0]  %s366, 256, %s7, [#allocation4], 128, 128, 8
    $region61: #{gpt_forward.9} parent=1 // pred_fallthru
      _
    // Predicated region
    $region62: #{gpt_forward.9} parent=1 // pred_check
      _
    $region63: #{gpt_forward.9} parent=1 // pred_check_branch
      %373 = sbr.rel (0) target = $region65
    $region64: #{gpt_forward.9} parent=1 // pred_region
      %374 = dma.done [#allocation4], 256
    $region65: #{gpt_forward.9} parent=1 // pred_fallthru
      _
    %375 = vsyncpa [#allocation3], 1
    %376 = vsyncpa [#allocation6], 1
    %377 = vsyncpa [#allocation9], 1
    %378 = vsyncpa [#allocation12], 1
    %379 = vsyncpa [#allocation4], 1

// kernel: gpt_forward.8
$region0: #{gpt_forward.8}
  #allocation0 [shape = 'u32[]', space=smem, size = 0x4, offset = 0x4, fixed_abs, tag = 'smem constant byte address 0x4 - core index']
  #allocation1 [shape = 'u32[144,128]{1,0:T(1,128)}', space=vmem, size = 0x12000, scoped, tag = 'internal scratch']
  %s0 = inlined_call_operand.hbm [shape: bf16[2,8,96], index: 0, kind: input, shape index: {}]
  %s1 = inlined_call_operand.hbm [shape: f32[2,8,32], index: 1, kind: input, shape index: {}]
  %s2 = inlined_call_operand.hbm [shape: bf16[32,32], index: 2, kind: input, shape index: {}]
  %s3 = inlined_call_operand.hbm [shape: f32[1,32], index: 3, kind: input, shape index: {}]
  %s4 = inlined_call_operand.hbm [shape: f32[2,8,32], index: 4, kind: output, shape index: {0}]
  %s5 = inlined_call_operand.hbm [shape: bf16[2,4,8,8], index: 5, kind: output, shape index: {1}]
  %6 = xla_tuple %s4, %s5
  %s7 = sld [smem:[#allocation0]]
  $region73: #{gpt_forward.8} parent=0
    _
  %s9 = ssub.s32 1, %s7
  %s10 = scalar_select 0, %s9, %s7
  $region1: #{gpt_forward.8} parent=0
    #allocation2 [shape = 'u8[4096]{0}', space=vmem, size = 0x1000, scoped, tag = 'input window, operand 0']
    #allocation3 [shape = 's32[2]{0}', space=sflag, size = 0x8, scoped, tag = 'scoped memory for gpt_forward.8']
    #allocation4 [shape = 's32[2]{0}', space=sflag, size = 0x8, scoped, tag = 'scoped memory for gpt_forward.8']
    #allocation5 [shape = 'u8[8192]{0}', space=vmem, size = 0x2000, scoped, tag = 'input window, operand 1']
    #allocation6 [shape = 's32[2]{0}', space=sflag, size = 0x8, scoped, tag = 'scoped memory for gpt_forward.8']
    #allocation7 [shape = 'u8[8192]{0}', space=vmem, size = 0x2000, scoped, tag = 'input window, operand 2, single buffered']
    #allocation8 [shape = 'u8[512]{0}', space=vmem, size = 0x400, scoped, tag = 'input window, operand 3, single buffered']
    #allocation9 [shape = 's32[1]{0}', space=sflag, size = 0x4, scoped, tag = 'scoped memory for gpt_forward.8']
    #allocation10 [shape = 'u8[8192]{0}', space=vmem, size = 0x2000, scoped, tag = 'output window, operand 0']
    #allocation11 [shape = 'u8[16384]{0}', space=vmem, size = 0x4000, scoped, tag = 'output window, operand 1']
    #allocation12 [shape = 's32[2]{0}', space=sflag, size = 0x8, scoped, tag = 'scoped memory for gpt_forward.8']
    %11 = vsyncpa [#allocation3], 0
    %s12 = scalar_lea.sflag [#allocation3], 1
    %13 = vsyncpa %s12, 0
    %14 = vsyncpa [#allocation6], 0
    %s15 = scalar_lea.sflag [#allocation6], 1
    %16 = vsyncpa %s15, 0
    %17 = vsyncpa [#allocation9], 0
    %18 = vsyncpa [#allocation4], 0
    %s19 = scalar_lea.sflag [#allocation4], 1
    %20 = vsyncpa %s19, 0
    %21 = vsyncpa [#allocation12], 0
    %s22 = scalar_lea.sflag [#allocation12], 1
    %23 = vsyncpa %s22, 0
    loop: start=0, step=1, limit=4
    $region2: #{gpt_forward.8} parent=1 // loop_pre_header
      _
    $region3: #{gpt_forward.8} parent=1 // loop_header
      %s25 = sphi 0, %s29
      %p26 = scmp.ge.s32.totalorder %s25, 4
      %s35 = sphi 0, %s37
      %s38 = sphi 0, %s35
      %s39 = sphi 0, %s38
      %s55 = sphi 0, %s39
      %s61 = sphi 0, %s63
      %s64 = sphi 0, %s61
      %s65 = sphi 0, %s64
      %s81 = sphi 0, %s65
      %s85 = sphi 0, %s85
      %s87 = sphi 0, %s85
      %s88 = sphi 0, %s87
      %s102 = sphi 0, %s88
      %s106 = sphi 0, %s106
      %s108 = sphi 0, %s106
      %s109 = sphi 0, %s108
      %s123 = sphi 0, %s109
      %s129 = sphi 0, %s131
      %s132 = sphi 0, %s129
      %s133 = sphi 0, %s132
      %s149 = sphi 0, %s133
      %s155 = sphi 0, %s157
      %s158 = sphi 0, %s155
      %s159 = sphi 0, %s158
      %s175 = sphi 0, %s159
    $region4: #{gpt_forward.8} parent=1 // loop_header_branch
      %28 = sbr.rel (%p26) target = $region8
    $region5: #{gpt_forward.8} parent=1 // loop_body
      %s30 = ssub.s32 %s25, 1
      %s31 = ssub.s32 %s25, 2
      %s32 = sadd.s32 %s25, 1
      %s33 = ssub.s32 %s25, %s32
      %p34 = scmp.eq.s32.totalorder %s33, 0
      %s36 = sadd.s32 %s35, 1
      %s37 = scalar_select %p34, %s35, %s36
      %p40 = pneg %p34
      %p41 = scmp.eq.s32.totalorder %s25, 1
      %p42 = por %p40, %p41
      %p43 = scmp.ne.s32.totalorder %s35, %s38
      %p44 = scmp.eq.s32.totalorder %s25, 0
      %p45 = por %p43, %p44
      %p46 = scmp.ne.s32.totalorder %s35, %s38
      %p47 = scmp.eq.s32.totalorder %s30, 1
      %p48 = por %p46, %p47
      %p49 = scmp.ne.s32.totalorder %s38, %s39
      %p50 = scmp.eq.s32.totalorder %s30, 0
      %p51 = por %p49, %p50
      %p52 = scmp.ne.s32.totalorder %s38, %s39
      %p53 = scmp.eq.s32.totalorder %s31, 1
      %p54 = por %p52, %p53
      %p56 = scmp.ne.s32.totalorder %s39, %s55
      %p57 = scmp.eq.s32.totalorder %s31, 0
      %p58 = por %p56, %p57
      %s59 = ssub.s32 %s25, %s32
      %p60 = scmp.eq.s32.totalorder %s59, 0
      %s62 = sadd.s32 %s61, 1
      %s63 = scalar_select %p60, %s61, %s62
      %p66 = pneg %p60
      %p67 = scmp.eq.s32.totalorder %s25, 1
      %p68 = por %p66, %p67
      %p69 = scmp.ne.s32.totalorder %s61, %s64
      %p70 = scmp.eq.s32.totalorder %s25, 0
      %p71 = por %p69, %p70
      %p72 = scmp.ne.s32.totalorder %s61, %s64
      %p73 = scmp.eq.s32.totalorder %s30, 1
      %p74 = por %p72, %p73
      %p75 = scmp.ne.s32.totalorder %s64, %s65
      %p76 = scmp.eq.s32.totalorder %s30, 0
      %p77 = por %p75, %p76
      %p78 = scmp.ne.s32.totalorder %s64, %s65
      %p79 = scmp.eq.s32.totalorder %s31, 1
      %p80 = por %p78, %p79
      %p82 = scmp.ne.s32.totalorder %s65, %s81
      %p83 = scmp.eq.s32.totalorder %s31, 0
      %p84 = por %p82, %p83
      %s86 = sadd.s32 %s85, 1
      %p89 = scmp.eq.s32.totalorder %s25, 1
      %p90 = scmp.ne.s32.totalorder %s85, %s87
      %p91 = scmp.eq.s32.totalorder %s25, 0
      %p92 = por %p90, %p91
      %p93 = scmp.ne.s32.totalorder %s85, %s87
      %p94 = scmp.eq.s32.totalorder %s30, 1
      %p95 = por %p93, %p94
      %p96 = scmp.ne.s32.totalorder %s87, %s88
      %p97 = scmp.eq.s32.totalorder %s30, 0
      %p98 = por %p96, %p97
      %p99 = scmp.ne.s32.totalorder %s87, %s88
      %p100 = scmp.eq.s32.totalorder %s31, 1
      %p101 = por %p99, %p100
      %p103 = scmp.ne.s32.totalorder %s88, %s102
      %p104 = scmp.eq.s32.totalorder %s31, 0
      %p105 = por %p103, %p104
      %s107 = sadd.s32 %s106, 1
      %p110 = scmp.eq.s32.totalorder %s25, 1
      %p111 = scmp.ne.s32.totalorder %s106, %s108
      %p112 = scmp.eq.s32.totalorder %s25, 0
      %p113 = por %p111, %p112
      %p114 = scmp.ne.s32.totalorder %s106, %s108
      %p115 = scmp.eq.s32.totalorder %s30, 1
      %p116 = por %p114, %p115
      %p117 = scmp.ne.s32.totalorder %s108, %s109
      %p118 = scmp.eq.s32.totalorder %s30, 0
      %p119 = por %p117, %p118
      %p120 = scmp.ne.s32.totalorder %s108, %s109
      %p121 = scmp.eq.s32.totalorder %s31, 1
      %p122 = por %p120, %p121
      %p124 = scmp.ne.s32.totalorder %s109, %s123
      %p125 = scmp.eq.s32.totalorder %s31, 0
      %p126 = por %p124, %p125
      %s127 = ssub.s32 %s25, %s32
      %p128 = scmp.eq.s32.totalorder %s127, 0
      %s130 = sadd.s32 %s129, 1
      %s131 = scalar_select %p128, %s129, %s130
      %p134 = pneg %p128
      %p135 = scmp.eq.s32.totalorder %s25, 1
      %p136 = por %p134, %p135
      %p137 = scmp.ne.s32.totalorder %s129, %s132
      %p138 = scmp.eq.s32.totalorder %s25, 0
      %p139 = por %p137, %p138
      %p140 = scmp.ne.s32.totalorder %s129, %s132
      %p141 = scmp.eq.s32.totalorder %s30, 1
      %p142 = por %p140, %p141
      %p143 = scmp.ne.s32.totalorder %s132, %s133
      %p144 = scmp.eq.s32.totalorder %s30, 0
      %p145 = por %p143, %p144
      %p146 = scmp.ne.s32.totalorder %s132, %s133
      %p147 = scmp.eq.s32.totalorder %s31, 1
      %p148 = por %p146, %p147
      %p150 = scmp.ne.s32.totalorder %s133, %s149
      %p151 = scmp.eq.s32.totalorder %s31, 0
      %p152 = por %p150, %p151
      %s153 = ssub.s32 %s25, %s32
      %p154 = scmp.eq.s32.totalorder %s153, 0
      %s156 = sadd.s32 %s155, 1
      %s157 = scalar_select %p154, %s155, %s156
      %p160 = pneg %p154
      %p161 = scmp.eq.s32.totalorder %s25, 1
      %p162 = por %p160, %p161
      %p163 = scmp.ne.s32.totalorder %s155, %s158
      %p164 = scmp.eq.s32.totalorder %s25, 0
      %p165 = por %p163, %p164
      %p166 = scmp.ne.s32.totalorder %s155, %s158
      %p167 = scmp.eq.s32.totalorder %s30, 1
      %p168 = por %p166, %p167
      %p169 = scmp.ne.s32.totalorder %s158, %s159
      %p170 = scmp.eq.s32.totalorder %s30, 0
      %p171 = por %p169, %p170
      %p172 = scmp.ne.s32.totalorder %s158, %s159
      %p173 = scmp.eq.s32.totalorder %s31, 1
      %p174 = por %p172, %p173
      %p176 = scmp.ne.s32.totalorder %s159, %s175
      %p177 = scmp.eq.s32.totalorder %s31, 0
      %p178 = por %p176, %p177
      %p179 = scmp.le.s32.totalorder 1, %s25
      %p180 = scmp.lt.s32.totalorder %s25, 3
      %p181 = pnand %p179, %p180
      %p182 = pneg %p181
      // Predicated region
      $region9: #{gpt_forward.8} parent=5 // pred_check
        _
      $region10: #{gpt_forward.8} parent=5 // pred_check_branch
        %184 = sbr.rel (%p181) target = $region12
      $region11: #{gpt_forward.8} parent=5 // pred_region
        %s185 = ssub.s32 %s25, 1
        // Predicated region
        $region13: #{gpt_forward.8} parent=11 // pred_check
          %p186 = pneg %p98
        $region14: #{gpt_forward.8} parent=11 // pred_check_branch
          %188 = sbr.rel (%p186) target = $region16
        $region15: #{gpt_forward.8} parent=11 // pred_region
          %s190 = ssub.s32 256, 256
          %191 = vsyncadd [#allocation6], %s190
          %s192 = sshll.u32 [#allocation7], 4
          %s193 = int_to_ptr.vmem [resolvable:$true] %s192
          %198 = dma.hbm_to_vmem [thread:$0]  %s2, 256, %s193, [#allocation6], 64, 64, 4
        $region16: #{gpt_forward.8} parent=11 // pred_fallthru
          _
        // Predicated region
        $region17: #{gpt_forward.8} parent=11 // pred_check
          %p199 = pneg %p119
        $region18: #{gpt_forward.8} parent=11 // pred_check_branch
          %201 = sbr.rel (%p199) target = $region20
        $region19: #{gpt_forward.8} parent=11 // pred_region
          %s203 = ssub.s32 16, 16
          %204 = vsyncadd [#allocation9], %s203
          %s206 = sshll.u32 [#allocation8], 4
          %s207 = int_to_ptr.vmem [resolvable:$true] %s206
          %209 = dma.hbm_to_vmem [thread:$0]  %s3, 16, %s207, [#allocation9]
        $region20: #{gpt_forward.8} parent=11 // pred_fallthru
          _
      $region12: #{gpt_forward.8} parent=5 // pred_fallthru
        _
      %p210 = scmp.lt.s32.totalorder %s25, 2
      // Predicated region
      $region21: #{gpt_forward.8} parent=5 // pred_check
        %p211 = pneg %p210
      $region22: #{gpt_forward.8} parent=5 // pred_check_branch
        %213 = sbr.rel (%p211) target = $region24
      $region23: #{gpt_forward.8} parent=5 // pred_region
        // Predicated region
        $region25: #{gpt_forward.8} parent=23 // pred_check
          %p214 = pneg %p45
        $region26: #{gpt_forward.8} parent=23 // pred_check_branch
          %216 = sbr.rel (%p214) target = $region28
        $region27: #{gpt_forward.8} parent=23 // pred_region
          %s217 = sand.u32 %s35, 1
          %s218 = scalar_lea.sflag [#allocation3], %s217
          %s219 = sand.u32 %s35, 1
          %s220 = smul.addr %s219, 4
          %s221 = scalar_lea.vmem [#allocation2], %s220
          %s223 = ssub.s32 64, 64
          %224 = vsyncadd %s218, %s223
          %s225 = smul.addr %s25, 64
          %s226 = scalar_lea.hbm %s0, %s225
          %s228 = sshll.u32 %s221, 4
          %s229 = int_to_ptr.vmem [resolvable:$true] %s228
          %231 = dma.hbm_to_vmem [thread:$0]  %s226, 64, %s229, %s218
        $region28: #{gpt_forward.8} parent=23 // pred_fallthru
          _
        // Predicated region
        $region29: #{gpt_forward.8} parent=23 // pred_check
          %p232 = pneg %p71
        $region30: #{gpt_forward.8} parent=23 // pred_check_branch
          %234 = sbr.rel (%p232) target = $region32
        $region31: #{gpt_forward.8} parent=23 // pred_region
          %s235 = sand.u32 %s25, 1
          %s236 = scalar_lea.sflag [#allocation6], %s235
          %s237 = sand.u32 %s61, 1
          %s238 = smul.addr %s237, 8
          %s239 = scalar_lea.vmem [#allocation5], %s238
          %s241 = ssub.s32 128, 128
          %242 = vsyncadd %s236, %s241
          %s243 = smul.addr %s25, 128
          %s244 = scalar_lea.hbm %s1, %s243
          %s246 = sshll.u32 %s239, 4
          %s247 = int_to_ptr.vmem [resolvable:$true] %s246
          %249 = dma.hbm_to_vmem [thread:$0]  %s244, 128, %s247, %s236
        $region32: #{gpt_forward.8} parent=23 // pred_fallthru
          _
      $region24: #{gpt_forward.8} parent=5 // pred_fallthru
        _
      %p250 = scmp.le.s32.totalorder 1, %s25
      %p251 = scmp.lt.s32.totalorder %s25, 3
      %p252 = pnand %p250, %p251
      %p253 = pneg %p252
      // Predicated region
      $region33: #{gpt_forward.8} parent=5 // pred_check
        _
      $region34: #{gpt_forward.8} parent=5 // pred_check_branch
        %255 = sbr.rel (%p252) target = $region36
      $region35: #{gpt_forward.8} parent=5 // pred_region
        %s256 = ssub.s32 %s25, 1
        %s257 = sand.u32 %s38, 1
        %s258 = scalar_lea.sflag [#allocation3], %s257
        %s259 = sand.u32 %s38, 1
        %s260 = smul.addr %s259, 4
        %s261 = scalar_lea.vmem [#allocation2], %s260
        // Predicated region
        $region37: #{gpt_forward.8} parent=35 // pred_check
          %p262 = pneg %p51
        $region38: #{gpt_forward.8} parent=35 // pred_check_branch
          %264 = sbr.rel (%p262) target = $region40
        $region39: #{gpt_forward.8} parent=35 // pred_region
          %265 = dma.done %s258, 64
        $region40: #{gpt_forward.8} parent=35 // pred_fallthru
          _
        %s266 = sand.u32 %s30, 1
        %s267 = scalar_lea.sflag [#allocation6], %s266
        %s268 = sand.u32 %s64, 1
        %s269 = smul.addr %s268, 8
        %s270 = scalar_lea.vmem [#allocation5], %s269
        // Predicated region
        $region41: #{gpt_forward.8} parent=35 // pred_check
          %p271 = pneg %p77
        $region42: #{gpt_forward.8} parent=35 // pred_check_branch
          %273 = sbr.rel (%p271) target = $region44
        $region43: #{gpt_forward.8} parent=35 // pred_region
          %274 = dma.done %s267, 128
        $region44: #{gpt_forward.8} parent=35 // pred_fallthru
          _
        // Predicated region
        $region45: #{gpt_forward.8} parent=35 // pred_check
          %p275 = pneg %p98
        $region46: #{gpt_forward.8} parent=35 // pred_check_branch
          %277 = sbr.rel (%p275) target = $region48
        $region47: #{gpt_forward.8} parent=35 // pred_region
          %278 = dma.done [#allocation6], 256
        $region48: #{gpt_forward.8} parent=35 // pred_fallthru
          _
        // Predicated region
        $region49: #{gpt_forward.8} parent=35 // pred_check
          %p279 = pneg %p119
        $region50: #{gpt_forward.8} parent=35 // pred_check_branch
          %281 = sbr.rel (%p279) target = $region52
        $region51: #{gpt_forward.8} parent=35 // pred_region
          %282 = dma.done [#allocation9], 16
        $region52: #{gpt_forward.8} parent=35 // pred_fallthru
          _
        %s283 = sand.u32 %s38, 1
        %s284 = scalar_lea.sflag [#allocation3], %s283
        %s285 = sand.u32 %s38, 1
        %s286 = smul.addr %s285, 4
        %s287 = scalar_lea.vmem [#allocation2], %s286
        %p288 = pneg %p51
        %p289 = pneg %p48
        %s290 = sand.u32 %s30, 1
        %s291 = scalar_lea.sflag [#allocation6], %s290
        %s292 = sand.u32 %s64, 1
        %s293 = smul.addr %s292, 8
        %s294 = scalar_lea.vmem [#allocation5], %s293
        %p295 = pneg %p77
        %p296 = pneg %p74
        %p297 = pneg %p98
        %p298 = pneg %p95
        %p299 = pneg %p119
        %p300 = pneg %p116
        %p301 = pneg %p145
        %p302 = pneg %p142
        %s303 = sand.u32 %s132, 1
        %s304 = scalar_lea.sflag [#allocation4], %s303
        %s305 = sand.u32 %s132, 1
        %s306 = smul.addr %s305, 8
        %s307 = scalar_lea.vmem [#allocation10], %s306
        %p308 = pneg %p171
        %p309 = pneg %p168
        %s310 = sand.u32 %s158, 1
        %s311 = scalar_lea.sflag [#allocation12], %s310
        %s312 = sand.u32 %s158, 1
        %s313 = smul.addr %s312, 16
        %s314 = scalar_lea.vmem [#allocation11], %s313
        %v317 = vld [vmem:[%s261] sm:$0xf]
        %v318 = vld [vmem:[%s270] sm:$0xff]
        %v319 = vlaneseq
        %v320 = vshrl.u32 %v319, 7
        %v321 = vlaneseq
        %v322 = vand.u32 %v321, 127
        %vm323 = vcmp.le.s32.totalorder %v322, %v320
        %v324 = vmul.bf16 %v317, 1052065461
        %v326 = vunpack.c.l.b16 %v317
        %v327 = vpack.c.b16 %v326, %v326
        %328 = vrot.lane.b32.xlu0 %v327, 96
        %v329 = vpop.permute.xlu0 %328
        %vm330 = vcmask 64512
        %v332 = vsel %vm330, %v324, 0
        %v335 = vsel %vm330, %v329, 0
        %337 = vmatprep.subr.bf16.mxu0 0
        %338 = vmatpush1.bf16.xpose.msra.mxu0 %v335
        %339 = vmatprep.subr.bf16.mxu0 0
        %340 = vmatpush1.bf16.xpose.msra.mxu0 0
        %341 = vmatprep.subr.bf16.mxu0 0
        %342 = vmatpush1.bf16.xpose.msra.mxu0 0
        %343 = vmatprep.subr.bf16.mxu0 0
        %344 = vmatpush1.bf16.xpose.msra.mxu0 0
        %345 = vmatprep.subr.bf16.mxu0 0
        %346 = vmatpush1.bf16.xpose.msra.mxu0 0
        %347 = vmatprep.subr.bf16.mxu0 0
        %348 = vmatpush1.bf16.xpose.msra.mxu0 0
        %349 = vmatprep.subr.bf16.mxu0 0
        %350 = vmatpush1.bf16.xpose.msra.mxu0 0
        %351 = vmatprep.subr.bf16.mxu0 0
        %352 = vmatpush1.bf16.xpose.msra.mxu0 0
        %353 = vmatprep.subr.bf16.mxu0 0
        %354 = vmatpush1.bf16.xpose.msra.mxu0 0
        %355 = vmatprep.subr.bf16.mxu0 0
        %356 = vmatpush1.bf16.xpose.msra.mxu0 0
        %357 = vmatprep.subr.bf16.mxu0 0
        %358 = vmatpush1.bf16.xpose.msra.mxu0 0
        %359 = vmatprep.subr.bf16.mxu0 0
        %360 = vmatpush1.bf16.xpose.msra.mxu0 0
        %361 = vmatprep.subr.bf16.mxu0 0
        %362 = vmatpush1.bf16.xpose.msra.mxu0 0
        %363 = vmatprep.subr.bf16.mxu0 0
        %364 = vmatpush1.bf16.xpose.msra.mxu0 0
        %365 = vmatprep.subr.bf16.mxu0 0
        %366 = vmatpush1.bf16.xpose.msra.mxu0 0
        %367 = vmatprep.subr.bf16.mxu0 0
        %368 = vmatpush1.bf16.xpose.msra.mxu0 0
        %369 = vmatprep.mubr.bf16.mxu0 0
        %370 = vmatmul.mubr.bf16.gmra.mrb[0].mxu0 %v332
        %v371 = vpop.f32.mrb[0].mxu0
        %v372 = vadd.f32 0.0, %v371
        %v373 = vpop.f32.mrb[0].mxu0
        %v374 = vpop.f32.mrb[0].mxu0
        %v375 = vpop.f32.mrb[0].mxu0
        %376 = vdwg.mxu0
        %v377 = vsel %vm323, %v372, -inf
        %v378 = vsel %vm330, %v377, -inf
        %379 = vmax.xlane.f32.xlu0 %v378
        %v380 = vpop.xlane.xlu0 %379
        %v381 = vsub.f32 %v377, %v380
        %v382 = vmul.f32 %v381, 1.442695
        %v383 = vpow.pop %v382
        %v384 = vsel %vm330, %v383, 0.0
        %385 = vadd.xlane.f32.xlu0 %v384
        %v386 = vpop.xlane.xlu0 %385
        %v387 = vrcp.pop %v386
        %v388 = vmul.f32 %v383, %v387
        %v389 = vpack.c.bf16 %v388, %v388
        %vm390 = vcmask 60416
        %391 = vst.msk [vmem:[%s314] sm:$0xf] %vm390, %v389
        %392 = vrot.lane.b32.xlu0 %v327, 64
        %v393 = vpop.permute.xlu0 %392
        %v395 = vsel %vm330, %v389, 0
        %vm397 = vcmask 1043456
        %v399 = vsel %vm397, %v393, 0
        %401 = vmatprep.subr.bf16.mxu0 0
        %402 = vmatpush1.bf16.msra.mxu0 %v399
        %403 = vmatprep.subr.bf16.mxu0 0
        %404 = vmatpush1.bf16.msra.mxu0 0
        %405 = vmatprep.subr.bf16.mxu0 0
        %406 = vmatpush1.bf16.msra.mxu0 0
        %407 = vmatprep.subr.bf16.mxu0 0
        %408 = vmatpush1.bf16.msra.mxu0 0
        %409 = vmatprep.subr.bf16.mxu0 0
        %410 = vmatpush1.bf16.msra.mxu0 0
        %411 = vmatprep.subr.bf16.mxu0 0
        %412 = vmatpush1.bf16.msra.mxu0 0
        %413 = vmatprep.subr.bf16.mxu0 0
        %414 = vmatpush1.bf16.msra.mxu0 0
        %415 = vmatprep.subr.bf16.mxu0 0
        %416 = vmatpush1.bf16.msra.mxu0 0
        %417 = vmatprep.subr.bf16.mxu0 0
        %418 = vmatpush1.bf16.msra.mxu0 0
        %419 = vmatprep.subr.bf16.mxu0 0
        %420 = vmatpush1.bf16.msra.mxu0 0
        %421 = vmatprep.subr.bf16.mxu0 0
        %422 = vmatpush1.bf16.msra.mxu0 0
        %423 = vmatprep.subr.bf16.mxu0 0
        %424 = vmatpush1.bf16.msra.mxu0 0
        %425 = vmatprep.subr.bf16.mxu0 0
        %426 = vmatpush1.bf16.msra.mxu0 0
        %427 = vmatprep.subr.bf16.mxu0 0
        %428 = vmatpush1.bf16.msra.mxu0 0
        %429 = vmatprep.subr.bf16.mxu0 0
        %430 = vmatpush1.bf16.msra.mxu0 0
        %431 = vmatprep.subr.bf16.mxu0 0
        %432 = vmatpush1.bf16.msra.mxu0 0
        %433 = vmatprep.mubr.bf16.mxu0 0
        %434 = vmatmul.mubr.bf16.gmra.mrb[0].mxu0 %v395
        %v435 = vpop.f32.mrb[0].mxu0
        %v436 = vadd.f32 0.0, %v435
        %v437 = vpop.f32.mrb[0].mxu0
        %v438 = vpop.f32.mrb[0].mxu0
        %v439 = vpop.f32.mrb[0].mxu0
        %440 = vdwg.mxu0
        %v442 = vunpack.c.l.b16 %v324
        %v443 = vpack.c.b16 %v442, %v442
        %444 = vrot.lane.b32.xlu0 %v443, 120
        %v445 = vpop.permute.xlu0 %444
        %446 = vrot.lane.b32.xlu0 %v327, 88
        %v447 = vpop.permute.xlu0 %446
        %v449 = vsel %vm330, %v445, 0
        %v452 = vsel %vm330, %v447, 0
        %454 = vmatprep.subr.bf16.mxu0 0
        %455 = vmatpush1.bf16.xpose.msra.mxu0 %v452
        %456 = vmatprep.subr.bf16.mxu0 0
        %457 = vmatpush1.bf16.xpose.msra.mxu0 0
        %458 = vmatprep.subr.bf16.mxu0 0
        %459 = vmatpush1.bf16.xpose.msra.mxu0 0
        %460 = vmatprep.subr.bf16.mxu0 0
        %461 = vmatpush1.bf16.xpose.msra.mxu0 0
        %462 = vmatprep.subr.bf16.mxu0 0
        %463 = vmatpush1.bf16.xpose.msra.mxu0 0
        %464 = vmatprep.subr.bf16.mxu0 0
        %465 = vmatpush1.bf16.xpose.msra.mxu0 0
        %466 = vmatprep.subr.bf16.mxu0 0
        %467 = vmatpush1.bf16.xpose.msra.mxu0 0
        %468 = vmatprep.subr.bf16.mxu0 0
        %469 = vmatpush1.bf16.xpose.msra.mxu0 0
        %470 = vmatprep.subr.bf16.mxu0 0
        %471 = vmatpush1.bf16.xpose.msra.mxu0 0
        %472 = vmatprep.subr.bf16.mxu0 0
        %473 = vmatpush1.bf16.xpose.msra.mxu0 0
        %474 = vmatprep.subr.bf16.mxu0 0
        %475 = vmatpush1.bf16.xpose.msra.mxu0 0
        %476 = vmatprep.subr.bf16.mxu0 0
        %477 = vmatpush1.bf16.xpose.msra.mxu0 0
        %478 = vmatprep.subr.bf16.mxu0 0
        %479 = vmatpush1.bf16.xpose.msra.mxu0 0
        %480 = vmatprep.subr.bf16.mxu0 0
        %481 = vmatpush1.bf16.xpose.msra.mxu0 0
        %482 = vmatprep.subr.bf16.mxu0 0
        %483 = vmatpush1.bf16.xpose.msra.mxu0 0
        %484 = vmatprep.subr.bf16.mxu0 0
        %485 = vmatpush1.bf16.xpose.msra.mxu0 0
        %486 = vmatprep.mubr.bf16.mxu0 0
        %487 = vmatmul.mubr.bf16.gmra.mrb[0].mxu0 %v449
        %v488 = vpop.f32.mrb[0].mxu0
        %v489 = vadd.f32 0.0, %v488
        %v490 = vpop.f32.mrb[0].mxu0
        %v491 = vpop.f32.mrb[0].mxu0
        %v492 = vpop.f32.mrb[0].mxu0
        %493 = vdwg.mxu0
        %v494 = vsel %vm323, %v489, -inf
        %v495 = vsel %vm330, %v494, -inf
        %496 = vmax.xlane.f32.xlu0 %v495
        %v497 = vpop.xlane.xlu0 %496
        %v498 = vsub.f32 %v494, %v497
        %v499 = vmul.f32 %v498, 1.442695
        %v500 = vpow.pop %v499
        %v501 = vsel %vm330, %v500, 0.0
        %502 = vadd.xlane.f32.xlu0 %v501
        %v503 = vpop.xlane.xlu0 %502
        %v504 = vrcp.pop %v503
        %v505 = vmul.f32 %v500, %v504
        %v506 = vpack.c.bf16 %v505, %v505
        %s507 = scalar_lea.vmem %s314, 4 [#allocation11]
        %508 = vst.msk [vmem:[%s507] sm:$0xf] %vm390, %v506
        %509 = vrot.lane.b32.xlu0 %v327, 56
        %v510 = vpop.permute.xlu0 %509
        %v512 = vsel %vm330, %v506, 0
        %v515 = vsel %vm397, %v510, 0
        %517 = vmatprep.subr.bf16.mxu0 0
        %518 = vmatpush1.bf16.msra.mxu0 %v515
        %519 = vmatprep.subr.bf16.mxu0 0
        %520 = vmatpush1.bf16.msra.mxu0 0
        %521 = vmatprep.subr.bf16.mxu0 0
        %522 = vmatpush1.bf16.msra.mxu0 0
        %523 = vmatprep.subr.bf16.mxu0 0
        %524 = vmatpush1.bf16.msra.mxu0 0
        %525 = vmatprep.subr.bf16.mxu0 0
        %526 = vmatpush1.bf16.msra.mxu0 0
        %527 = vmatprep.subr.bf16.mxu0 0
        %528 = vmatpush1.bf16.msra.mxu0 0
        %529 = vmatprep.subr.bf16.mxu0 0
        %530 = vmatpush1.bf16.msra.mxu0 0
        %531 = vmatprep.subr.bf16.mxu0 0
        %532 = vmatpush1.bf16.msra.mxu0 0
        %533 = vmatprep.subr.bf16.mxu0 0
        %534 = vmatpush1.bf16.msra.mxu0 0
        %535 = vmatprep.subr.bf16.mxu0 0
        %536 = vmatpush1.bf16.msra.mxu0 0
        %537 = vmatprep.subr.bf16.mxu0 0
        %538 = vmatpush1.bf16.msra.mxu0 0
        %539 = vmatprep.subr.bf16.mxu0 0
        %540 = vmatpush1.bf16.msra.mxu0 0
        %541 = vmatprep.subr.bf16.mxu0 0
        %542 = vmatpush1.bf16.msra.mxu0 0
        %543 = vmatprep.subr.bf16.mxu0 0
        %544 = vmatpush1.bf16.msra.mxu0 0
        %545 = vmatprep.subr.bf16.mxu0 0
        %546 = vmatpush1.bf16.msra.mxu0 0
        %547 = vmatprep.subr.bf16.mxu0 0
        %548 = vmatpush1.bf16.msra.mxu0 0
        %549 = vmatprep.mubr.bf16.mxu0 0
        %550 = vmatmul.mubr.bf16.gmra.mrb[0].mxu0 %v512
        %v551 = vpop.f32.mrb[0].mxu0
        %v552 = vadd.f32 0.0, %v551
        %v553 = vpop.f32.mrb[0].mxu0
        %v554 = vpop.f32.mrb[0].mxu0
        %v555 = vpop.f32.mrb[0].mxu0
        %556 = vdwg.mxu0
        %557 = vrot.lane.b32.xlu0 %v443, 112
        %v558 = vpop.permute.xlu0 %557
        %559 = vrot.lane.b32.xlu0 %v327, 80
        %v560 = vpop.permute.xlu0 %559
        %v562 = vsel %vm330, %v558, 0
        %v565 = vsel %vm330, %v560, 0
        %567 = vmatprep.subr.bf16.mxu0 0
        %568 = vmatpush1.bf16.xpose.msra.mxu0 %v565
        %569 = vmatprep.subr.bf16.mxu0 0
        %570 = vmatpush1.bf16.xpose.msra.mxu0 0
        %571 = vmatprep.subr.bf16.mxu0 0
        %572 = vmatpush1.bf16.xpose.msra.mxu0 0
        %573 = vmatprep.subr.bf16.mxu0 0
        %574 = vmatpush1.bf16.xpose.msra.mxu0 0
        %575 = vmatprep.subr.bf16.mxu0 0
        %576 = vmatpush1.bf16.xpose.msra.mxu0 0
        %577 = vmatprep.subr.bf16.mxu0 0
        %578 = vmatpush1.bf16.xpose.msra.mxu0 0
        %579 = vmatprep.subr.bf16.mxu0 0
        %580 = vmatpush1.bf16.xpose.msra.mxu0 0
        %581 = vmatprep.subr.bf16.mxu0 0
        %582 = vmatpush1.bf16.xpose.msra.mxu0 0
        %583 = vmatprep.subr.bf16.mxu0 0
        %584 = vmatpush1.bf16.xpose.msra.mxu0 0
        %585 = vmatprep.subr.bf16.mxu0 0
        %586 = vmatpush1.bf16.xpose.msra.mxu0 0
        %587 = vmatprep.subr.bf16.mxu0 0
        %588 = vmatpush1.bf16.xpose.msra.mxu0 0
        %589 = vmatprep.subr.bf16.mxu0 0
        %590 = vmatpush1.bf16.xpose.msra.mxu0 0
        %591 = vmatprep.subr.bf16.mxu0 0
        %592 = vmatpush1.bf16.xpose.msra.mxu0 0
        %593 = vmatprep.subr.bf16.mxu0 0
        %594 = vmatpush1.bf16.xpose.msra.mxu0 0
        %595 = vmatprep.subr.bf16.mxu0 0
        %596 = vmatpush1.bf16.xpose.msra.mxu0 0
        %597 = vmatprep.subr.bf16.mxu0 0
        %598 = vmatpush1.bf16.xpose.msra.mxu0 0
        %599 = vmatprep.mubr.bf16.mxu0 0
        %600 = vmatmul.mubr.bf16.gmra.mrb[0].mxu0 %v562
        %v601 = vpop.f32.mrb[0].mxu0
        %v602 = vadd.f32 0.0, %v601
        %v603 = vpop.f32.mrb[0].mxu0
        %v604 = vpop.f32.mrb[0].mxu0
        %v605 = vpop.f32.mrb[0].mxu0
        %606 = vdwg.mxu0
        %v607 = vsel %vm323, %v602, -inf
        %v608 = vsel %vm330, %v607, -inf
        %609 = vmax.xlane.f32.xlu0 %v608
        %v610 = vpop.xlane.xlu0 %609
        %v611 = vsub.f32 %v607, %v610
        %v612 = vmul.f32 %v611, 1.442695
        %v613 = vpow.pop %v612
        %v614 = vsel %vm330, %v613, 0.0
        %615 = vadd.xlane.f32.xlu0 %v614
        %v616 = vpop.xlane.xlu0 %615
        %v617 = vrcp.pop %v616
        %v618 = vmul.f32 %v613, %v617
        %v619 = vpack.c.bf16 %v618, %v618
        %s620 = scalar_lea.vmem %s314, 8 [#allocation11]
        %621 = vst.msk [vmem:[%s620] sm:$0xf] %vm390, %v619
        %622 = vrot.lane.b32.xlu0 %v327, 48
        %v623 = vpop.permute.xlu0 %622
        %v625 = vsel %vm330, %v619, 0
        %v628 = vsel %vm397, %v623, 0
        %630 = vmatprep.subr.bf16.mxu0 0
        %631 = vmatpush1.bf16.msra.mxu0 %v628
        %632 = vmatprep.subr.bf16.mxu0 0
        %633 = vmatpush1.bf16.msra.mxu0 0
        %634 = vmatprep.subr.bf16.mxu0 0
        %635 = vmatpush1.bf16.msra.mxu0 0
        %636 = vmatprep.subr.bf16.mxu0 0
        %637 = vmatpush1.bf16.msra.mxu0 0
        %638 = vmatprep.subr.bf16.mxu0 0
        %639 = vmatpush1.bf16.msra.mxu0 0
        %640 = vmatprep.subr.bf16.mxu0 0
        %641 = vmatpush1.bf16.msra.mxu0 0
        %642 = vmatprep.subr.bf16.mxu0 0
        %643 = vmatpush1.bf16.msra.mxu0 0
        %644 = vmatprep.subr.bf16.mxu0 0
        %645 = vmatpush1.bf16.msra.mxu0 0
        %646 = vmatprep.subr.bf16.mxu0 0
        %647 = vmatpush1.bf16.msra.mxu0 0
        %648 = vmatprep.subr.bf16.mxu0 0
        %649 = vmatpush1.bf16.msra.mxu0 0
        %650 = vmatprep.subr.bf16.mxu0 0
        %651 = vmatpush1.bf16.msra.mxu0 0
        %652 = vmatprep.subr.bf16.mxu0 0
        %653 = vmatpush1.bf16.msra.mxu0 0
        %654 = vmatprep.subr.bf16.mxu0 0
        %655 = vmatpush1.bf16.msra.mxu0 0
        %656 = vmatprep.subr.bf16.mxu0 0
        %657 = vmatpush1.bf16.msra.mxu0 0
        %658 = vmatprep.subr.bf16.mxu0 0
        %659 = vmatpush1.bf16.msra.mxu0 0
        %660 = vmatprep.subr.bf16.mxu0 0
        %661 = vmatpush1.bf16.msra.mxu0 0
        %662 = vmatprep.mubr.bf16.mxu0 0
        %663 = vmatmul.mubr.bf16.gmra.mrb[0].mxu0 %v625
        %v664 = vpop.f32.mrb[0].mxu0
        %v665 = vadd.f32 0.0, %v664
        %v666 = vpop.f32.mrb[0].mxu0
        %v667 = vpop.f32.mrb[0].mxu0
        %v668 = vpop.f32.mrb[0].mxu0
        %669 = vdwg.mxu0
        %670 = vrot.lane.b32.xlu0 %v443, 104
        %v671 = vpop.permute.xlu0 %670
        %672 = vrot.lane.b32.xlu0 %v327, 72
        %v673 = vpop.permute.xlu0 %672
        %v675 = vsel %vm330, %v671, 0
        %v678 = vsel %vm330, %v673, 0
        %680 = vmatprep.subr.bf16.mxu0 0
        %681 = vmatpush1.bf16.xpose.msra.mxu0 %v678
        %682 = vmatprep.subr.bf16.mxu0 0
        %683 = vmatpush1.bf16.xpose.msra.mxu0 0
        %684 = vmatprep.subr.bf16.mxu0 0
        %685 = vmatpush1.bf16.xpose.msra.mxu0 0
        %686 = vmatprep.subr.bf16.mxu0 0
        %687 = vmatpush1.bf16.xpose.msra.mxu0 0
        %688 = vmatprep.subr.bf16.mxu0 0
        %689 = vmatpush1.bf16.xpose.msra.mxu0 0
        %690 = vmatprep.subr.bf16.mxu0 0
        %691 = vmatpush1.bf16.xpose.msra.mxu0 0
        %692 = vmatprep.subr.bf16.mxu0 0
        %693 = vmatpush1.bf16.xpose.msra.mxu0 0
        %694 = vmatprep.subr.bf16.mxu0 0
        %695 = vmatpush1.bf16.xpose.msra.mxu0 0
        %696 = vmatprep.subr.bf16.mxu0 0
        %697 = vmatpush1.bf16.xpose.msra.mxu0 0
        %698 = vmatprep.subr.bf16.mxu0 0
        %699 = vmatpush1.bf16.xpose.msra.mxu0 0
        %700 = vmatprep.subr.bf16.mxu0 0
        %701 = vmatpush1.bf16.xpose.msra.mxu0 0
        %702 = vmatprep.subr.bf16.mxu0 0
        %703 = vmatpush1.bf16.xpose.msra.mxu0 0
        %704 = vmatprep.subr.bf16.mxu0 0
        %705 = vmatpush1.bf16.xpose.msra.mxu0 0
        %706 = vmatprep.subr.bf16.mxu0 0
        %707 = vmatpush1.bf16.xpose.msra.mxu0 0
        %708 = vmatprep.subr.bf16.mxu0 0
        %709 = vmatpush1.bf16.xpose.msra.mxu0 0
        %710 = vmatprep.subr.bf16.mxu0 0
        %711 = vmatpush1.bf16.xpose.msra.mxu0 0
        %712 = vmatprep.mubr.bf16.mxu0 0
        %713 = vmatmul.mubr.bf16.gmra.mrb[0].mxu0 %v675
        %v714 = vpop.f32.mrb[0].mxu0
        %v715 = vadd.f32 0.0, %v714
        %v716 = vpop.f32.mrb[0].mxu0
        %v717 = vpop.f32.mrb[0].mxu0
        %v718 = vpop.f32.mrb[0].mxu0
        %719 = vdwg.mxu0
        %v720 = vsel %vm323, %v715, -inf
        %v721 = vsel %vm330, %v720, -inf
        %722 = vmax.xlane.f32.xlu0 %v721
        %v723 = vpop.xlane.xlu0 %722
        %v724 = vsub.f32 %v720, %v723
        %v725 = vmul.f32 %v724, 1.442695
        %v726 = vpow.pop %v725
        %v727 = vsel %vm330, %v726, 0.0
        %728 = vadd.xlane.f32.xlu0 %v727
        %v729 = vpop.xlane.xlu0 %728
        %v730 = vrcp.pop %v729
        %v731 = vmul.f32 %v726, %v730
        %v732 = vpack.c.bf16 %v731, %v731
        %s733 = scalar_lea.vmem %s314, 12 [#allocation11]
        %734 = vst.msk [vmem:[%s733] sm:$0xf] %vm390, %v732
        %735 = vrot.lane.b32.xlu0 %v327, 40
        %v736 = vpop.permute.xlu0 %735
        %v738 = vsel %vm330, %v732, 0
        %v741 = vsel %vm397, %v736, 0
        %743 = vmatprep.subr.bf16.mxu0 0
        %744 = vmatpush1.bf16.msra.mxu0 %v741
        %745 = vmatprep.subr.bf16.mxu0 0
        %746 = vmatpush1.bf16.msra.mxu0 0
        %747 = vmatprep.subr.bf16.mxu0 0
        %748 = vmatpush1.bf16.msra.mxu0 0
        %749 = vmatprep.subr.bf16.mxu0 0
        %750 = vmatpush1.bf16.msra.mxu0 0
        %751 = vmatprep.subr.bf16.mxu0 0
        %752 = vmatpush1.bf16.msra.mxu0 0
        %753 = vmatprep.subr.bf16.mxu0 0
        %754 = vmatpush1.bf16.msra.mxu0 0
        %755 = vmatprep.subr.bf16.mxu0 0
        %756 = vmatpush1.bf16.msra.mxu0 0
        %757 = vmatprep.subr.bf16.mxu0 0
        %758 = vmatpush1.bf16.msra.mxu0 0
        %759 = vmatprep.subr.bf16.mxu0 0
        %760 = vmatpush1.bf16.msra.mxu0 0
        %761 = vmatprep.subr.bf16.mxu0 0
        %762 = vmatpush1.bf16.msra.mxu0 0
        %763 = vmatprep.subr.bf16.mxu0 0
        %764 = vmatpush1.bf16.msra.mxu0 0
        %765 = vmatprep.subr.bf16.mxu0 0
        %766 = vmatpush1.bf16.msra.mxu0 0
        %767 = vmatprep.subr.bf16.mxu0 0
        %768 = vmatpush1.bf16.msra.mxu0 0
        %769 = vmatprep.subr.bf16.mxu0 0
        %770 = vmatpush1.bf16.msra.mxu0 0
        %771 = vmatprep.subr.bf16.mxu0 0
        %772 = vmatpush1.bf16.msra.mxu0 0
        %773 = vmatprep.subr.bf16.mxu0 0
        %774 = vmatpush1.bf16.msra.mxu0 0
        %775 = vmatprep.mubr.bf16.mxu0 0
        %776 = vmatmul.mubr.bf16.gmra.mrb[0].mxu0 %v738
        %v777 = vpop.f32.mrb[0].mxu0
        %v778 = vadd.f32 0.0, %v777
        %v779 = vpop.f32.mrb[0].mxu0
        %v780 = vpop.f32.mrb[0].mxu0
        %v781 = vpop.f32.mrb[0].mxu0
        %782 = vdwg.mxu0
        %784 = vrot.lane.b32.xlu0 %v552, 8
        %v785 = vpop.permute.xlu0 %784
        %788 = vrot.lane.b32.xlu0 %v665, 16
        %v789 = vpop.permute.xlu0 %788
        %792 = vrot.lane.b32.xlu0 %v778, 24
        %v793 = vpop.permute.xlu0 %792
        %v795 = vsel %vm330, %v436, %v785
        %vm796 = vcmask 130048
        %v797 = vsel %vm796, %v795, %v789
        %vm798 = vcmask 195584
        %v799 = vsel %vm798, %v797, %v793
        %v800 = vpack.c.bf16 %v799, %v799
        %v801 = vld [vmem:[#allocation7] sm:$0xf]
        %v802 = vld [vmem:[#allocation7 + $0x4] sm:$0xf]
        %v803 = vld [vmem:[#allocation7 + $0x8] sm:$0xf]
        %v804 = vld [vmem:[#allocation7 + $0xc] sm:$0xf]
        %v809 = vunpack.c.l.b16 %v801
        %v810 = vunpack.c.l.b16 %v802
        %v811 = vunpack.c.l.b16 %v803
        %v812 = vunpack.c.l.b16 %v804
        %v813 = vpack.c.b16 %v810, %v809
        %v814 = vpack.c.b16 %v812, %v811
        %vm817 = vcmask 261120
        %v819 = vsel %vm817, %v800, 0
        %821 = vmatprep.subr.bf16.mxu0 0
        %822 = vmatpush1.bf16.msra.mxu0 %v813
        %823 = vmatprep.subr.bf16.mxu0 0
        %824 = vmatpush1.bf16.msra.mxu0 %v814
        %825 = vmatprep.subr.bf16.mxu0 0
        %826 = vmatpush1.bf16.msra.mxu0 0
        %827 = vmatprep.subr.bf16.mxu0 0
        %828 = vmatpush1.bf16.msra.mxu0 0
        %829 = vmatprep.subr.bf16.mxu0 0
        %830 = vmatpush1.bf16.msra.mxu0 0
        %831 = vmatprep.subr.bf16.mxu0 0
        %832 = vmatpush1.bf16.msra.mxu0 0
        %833 = vmatprep.subr.bf16.mxu0 0
        %834 = vmatpush1.bf16.msra.mxu0 0
        %835 = vmatprep.subr.bf16.mxu0 0
        %836 = vmatpush1.bf16.msra.mxu0 0
        %837 = vmatprep.subr.bf16.mxu0 0
        %838 = vmatpush1.bf16.msra.mxu0 0
        %839 = vmatprep.subr.bf16.mxu0 0
        %840 = vmatpush1.bf16.msra.mxu0 0
        %841 = vmatprep.subr.bf16.mxu0 0
        %842 = vmatpush1.bf16.msra.mxu0 0
        %843 = vmatprep.subr.bf16.mxu0 0
        %844 = vmatpush1.bf16.msra.mxu0 0
        %845 = vmatprep.subr.bf16.mxu0 0
        %846 = vmatpush1.bf16.msra.mxu0 0
        %847 = vmatprep.subr.bf16.mxu0 0
        %848 = vmatpush1.bf16.msra.mxu0 0
        %849 = vmatprep.subr.bf16.mxu0 0
        %850 = vmatpush1.bf16.msra.mxu0 0
        %851 = vmatprep.subr.bf16.mxu0 0
        %852 = vmatpush1.bf16.msra.mxu0 0
        %853 = vmatprep.mubr.bf16.mxu0 0
        %854 = vmatmul.mubr.bf16.gmra.mrb[0].mxu0 %v819
        %v855 = vpop.f32.mrb[0].mxu0
        %v856 = vadd.f32 0.0, %v855
        %v857 = vpop.f32.mrb[0].mxu0
        %v858 = vpop.f32.mrb[0].mxu0
        %v859 = vpop.f32.mrb[0].mxu0
        %860 = vdwg.mxu0
        %v861 = vadd.f32 %v318, %v856
        %v862 = vld [vmem:[#allocation8] sm:$0x1]
        %v864 = vlaneseq
        %v865 = vshrl.u32 %v864, 7
        %v866 = vsub.s32 0, %v865
        %v867 = vrot.slane %v862, %v866
        %v869 = vadd.f32 %v861, %v867
        %870 = vst.msk [vmem:[%s307] sm:$0xff] %vm817, %v869
        %s871 = sand.u32 %s132, 1
        %s872 = scalar_lea.sflag [#allocation4], %s871
        %s873 = sand.u32 %s132, 1
        %s874 = smul.addr %s873, 8
        %s875 = scalar_lea.vmem [#allocation10], %s874
        %s876 = sand.u32 %s158, 1
        %s877 = scalar_lea.sflag [#allocation12], %s876
        %s878 = sand.u32 %s158, 1
        %s879 = smul.addr %s878, 16
        %s880 = scalar_lea.vmem [#allocation11], %s879
        // Predicated region
        $region53: #{gpt_forward.8} parent=35 // pred_check
          %p881 = pneg %p142
        $region54: #{gpt_forward.8} parent=35 // pred_check_branch
          %883 = sbr.rel (%p881) target = $region56
        $region55: #{gpt_forward.8} parent=35 // pred_region
          %s885 = ssub.s32 128, 128
          %886 = vsyncadd %s872, %s885
          %s887 = smul.addr %s30, 128
          %s888 = scalar_lea.hbm %s4, %s887
          %s890 = sshll.u32 %s875, 4
          %s891 = int_to_ptr.vmem [resolvable:$true] %s890
          %893 = dma.vmem_to_hbm [thread:$0]  %s891, 128, %s888, %s872
        $region56: #{gpt_forward.8} parent=35 // pred_fallthru
          _
        // Predicated region
        $region57: #{gpt_forward.8} parent=35 // pred_check
          %p894 = pneg %p168
        $region58: #{gpt_forward.8} parent=35 // pred_check_branch
          %896 = sbr.rel (%p894) target = $region60
        $region59: #{gpt_forward.8} parent=35 // pred_region
          %s898 = ssub.s32 256, 256
          %899 = vsyncadd %s877, %s898
          %s900 = smul.addr %s30, 4
          %s901 = smul.addr %s900, 64
          %s902 = scalar_lea.hbm %s5, %s901
          %s903 = sshll.u32 %s880, 4
          %s904 = int_to_ptr.vmem [resolvable:$true] %s903
          %909 = dma.vmem_to_hbm [thread:$0]  %s904, 256, %s902, %s877, 64, 64, 4
        $region60: #{gpt_forward.8} parent=35 // pred_fallthru
          _
      $region36: #{gpt_forward.8} parent=5 // pred_fallthru
        _
      %p910 = scmp.le.s32.totalorder 2, %s25
      // Predicated region
      $region61: #{gpt_forward.8} parent=5 // pred_check
        %p911 = pneg %p910
      $region62: #{gpt_forward.8} parent=5 // pred_check_branch
        %913 = sbr.rel (%p911) target = $region64
      $region63: #{gpt_forward.8} parent=5 // pred_region
        %s914 = ssub.s32 %s25, 2
        // Predicated region
        $region65: #{gpt_forward.8} parent=63 // pred_check
          %p915 = pneg %p148
        $region66: #{gpt_forward.8} parent=63 // pred_check_branch
          %917 = sbr.rel (%p915) target = $region68
        $region67: #{gpt_forward.8} parent=63 // pred_region
          %s918 = sand.u32 %s133, 1
          %s919 = scalar_lea.sflag [#allocation4], %s918
          %s920 = sand.u32 %s133, 1
          %s921 = smul.addr %s920, 8
          %s922 = scalar_lea.vmem [#allocation10], %s921
          %923 = dma.done %s919, 128
        $region68: #{gpt_forward.8} parent=63 // pred_fallthru
          _
        // Predicated region
        $region69: #{gpt_forward.8} parent=63 // pred_check
          %p924 = pneg %p174
        $region70: #{gpt_forward.8} parent=63 // pred_check_branch
          %926 = sbr.rel (%p924) target = $region72
        $region71: #{gpt_forward.8} parent=63 // pred_region
          %s927 = sand.u32 %s159, 1
          %s928 = scalar_lea.sflag [#allocation12], %s927
          %s929 = sand.u32 %s159, 1
          %s930 = smul.addr %s929, 16
          %s931 = scalar_lea.vmem [#allocation11], %s930
          %932 = dma.done %s928, 256
        $region72: #{gpt_forward.8} parent=63 // pred_fallthru
          _
      $region64: #{gpt_forward.8} parent=5 // pred_fallthru
        _
    $region6: #{gpt_forward.8} parent=1 // loop_footer
      %s29 = sadd.s32 1, %s25
    $region7: #{gpt_forward.8} parent=1 // loop_footer_branch
      %24 = sbr.rel target = $region3
    $region8: #{gpt_forward.8} parent=1 // loop_exit
      _
    %933 = vsyncpa [#allocation3], 1
    %s934 = scalar_lea.sflag [#allocation3], 1
    %935 = vsyncpa %s934, 1
    %936 = vsyncpa [#allocation6], 1
    %s937 = scalar_lea.sflag [#allocation6], 1
    %938 = vsyncpa %s937, 1
    %939 = vsyncpa [#allocation9], 1
    %940 = vsyncpa [#allocation4], 1
    %s941 = scalar_lea.sflag [#allocation4], 1
    %942 = vsyncpa %s941, 1
    %943 = vsyncpa [#allocation12], 1
    %s944 = scalar_lea.sflag [#allocation12], 1
    %945 = vsyncpa %s944, 1

</llo_original>
